<compile_context>
chip_gen: v7x
topology: tpu7x:2x2x1
jax: 0.10.0
libtpu: 0.0.40
codegen_flags: <defaults>
</compile_context>

<pallas_src>
import functools

import jax
import jax.numpy as jnp
from jax import lax
from jax.experimental import pallas as pl
from jax.experimental.pallas import tpu as pltpu


def _round_up(x, m):
    return (x + m - 1) // m * m


def _vmem_capacity_bytes(default=64 * 1024 * 1024):
    """Physical VMEM per core; falls back to v7x-sized 64 MiB (the smallest)."""
    try:
        info = pltpu.get_tpu_info()
        cap = getattr(info, "vmem_capacity_bytes", None)
        if cap:
            return int(cap)
    except Exception:
        pass
    return default


# ---------------------------------------------------------------------------
# Kernels
# ---------------------------------------------------------------------------

def _ffn_resident_kernel(x_ref, w1_ref, b1_ref, w2_ref, b2_ref, o_ref, *scratch,
                         tf, compute_dtype):
    """Weights VMEM-resident; grid is M tiles only, dim_ff is an in-kernel loop.

    Computes  o = relu(x @ W1 + b1) @ W2 + b2  with f32 accumulation
    (dropout_1 == identity: eval-mode semantics).
    """
    acc_ref = scratch[0] if scratch else o_ref      # f32 output: accumulate in place
    dim_ff = w1_ref.shape[1]
    nf = dim_ff // tf

    # Cast the x tile once per M tile (x stays f32 in HBM: no wrapper cast pass).
    x = x_ref[...].astype(compute_dtype)
    # Seed the accumulator with the output bias (saves a separate finalize add).
    acc_ref[...] = jnp.broadcast_to(b2_ref[...], acc_ref.shape).astype(jnp.float32)

    def step(fo):
        h = jnp.dot(x, w1_ref[:, pl.ds(fo, tf)],
                    preferred_element_type=jnp.float32)
        h = jnp.maximum(h + b1_ref[:, pl.ds(fo, tf)], 0.0)     # bias + ReLU in f32
        acc_ref[...] += jnp.dot(h.astype(compute_dtype), w2_ref[pl.ds(fo, tf), :],
                                preferred_element_type=jnp.float32)

    if nf <= 8:
        for f in range(nf):                         # short static loop: fully unrolled
            step(f * tf)
    else:
        def body(f, carry):
            fo = f * tf
            if tf % 128 == 0:
                fo = pl.multiple_of(fo, 128)        # aligned dynamic slice hint
            step(fo)
            return carry
        lax.fori_loop(0, nf, body, 0)

    if scratch:                                     # non-f32 output: one cast/store
        o_ref[...] = acc_ref[...].astype(o_ref.dtype)


def _ffn_streamed_kernel(x_ref, w1_ref, b1_ref, w2_ref, b2_ref, o_ref, *scratch,
                         compute_dtype):
    """Fallback when W1/W2 do not fit in VMEM: stream dim_ff tiles (grid axis f)."""
    f = pl.program_id(1)
    acc_ref = scratch[0] if scratch else o_ref      # f32 output: accumulate in place

    @pl.when(f == 0)
    def _():
        acc_ref[...] = jnp.broadcast_to(b2_ref[...], acc_ref.shape).astype(jnp.float32)

    x = x_ref[...].astype(compute_dtype)
    h = jnp.dot(x, w1_ref[...], preferred_element_type=jnp.float32)
    h = jnp.maximum(h + b1_ref[...], 0.0)           # bias + ReLU in f32
    acc_ref[...] += jnp.dot(h.astype(compute_dtype), w2_ref[...],
                            preferred_element_type=jnp.float32)

    if scratch:
        @pl.when(f == pl.num_programs(1) - 1)
        def _():
            o_ref[...] = acc_ref[...].astype(o_ref.dtype)


# ---------------------------------------------------------------------------
# Wrapper
# ---------------------------------------------------------------------------

def feed_forward(x, w1, b1, w2, b2, *, tm=None, tf=None,
                 compute_dtype=jnp.bfloat16, weights_resident=None):
    """Eval-mode Transformer FFN: linear_2(relu(linear_1(x))).

    x : [B, S, d_model]  (any float dtype; left un-cast in HBM)
    w1: [d_model, dim_ff] (= torch linear_1.weight.T),  b1: [dim_ff]
    w2: [dim_ff, d_model] (= torch linear_2.weight.T),  b2: [d_model]
    Pass w1/w2 already cast to `compute_dtype` to avoid a per-call cast pass.
    """
    B, S, d_model = x.shape
    dim_ff = w1.shape[1]
    out_dtype = x.dtype
    M = B * S

    vmem_cap = _vmem_capacity_bytes()
    small_vmem = vmem_cap <= 80 * 1024 * 1024       # v7x-class: 64 MiB VMEM, 2 TCs

    cbytes = jnp.dtype(compute_dtype).itemsize
    xbytes = jnp.dtype(x.dtype).itemsize
    obytes = jnp.dtype(out_dtype).itemsize

    # --- M (token) tiling --------------------------------------------------
    sub = 32 if cbytes == 1 else (16 if cbytes == 2 else 8)    # sublane packing
    if tm is None:
        tm = 128 if (small_vmem and d_model >= 2048) else 256
    tm = min(tm, _round_up(M, sub))
    # v7x has two TensorCores: make sure the "parallel" M axis has >= 2 tiles.
    if small_vmem and M > sub and _round_up(M, tm) // tm < 2:
        tm = max(sub, _round_up(_round_up(M, sub) // 2, sub))
    Mp = _round_up(M, tm)

    # --- dim_ff tiling -------------------------------------------------------
    if tf is None:
        tf = 512 if small_vmem else 1024            # fewer reduction steps on 128 MiB parts
    tf = min(tf, dim_ff)
    if dim_ff % tf != 0:
        for cand in (1024, 768, 512, 384, 256, 128):
            if cand <= tf and dim_ff % cand == 0:
                tf = cand
                break
        else:
            tf = dim_ff

    # --- VMEM budget / weight residency -------------------------------------
    use_scratch = out_dtype != jnp.float32
    x_out_vmem = 2 * tm * d_model * (xbytes + obytes)          # double-buffered tiles
    acc_vmem = tm * d_model * 4 if use_scratch else 0
    resident_w_vmem = 2 * (2 * d_model * dim_ff * cbytes + (dim_ff + d_model) * 4)
    streamed_w_vmem = 2 * (2 * tf * d_model * cbytes + (tf + d_model) * 4)
    if weights_resident is None:
        weights_resident = (resident_w_vmem + x_out_vmem + acc_vmem
                            <= int(0.75 * vmem_cap))
    needed = x_out_vmem + acc_vmem + (resident_w_vmem if weights_resident
                                      else streamed_w_vmem)
    vmem_limit = int(max(needed * 1.25 + (4 << 20), 32 << 20))
    vmem_limit = min(vmem_limit, vmem_cap - (2 << 20))

    # --- operands ------------------------------------------------------------
    x2d = x.reshape(M, d_model)                      # NOTE: no wrapper-side cast of x
    if Mp != M:
        x2d = jnp.pad(x2d, ((0, Mp - M), (0, 0)))
    w1c = w1 if w1.dtype == compute_dtype else w1.astype(compute_dtype)
    w2c = w2 if w2.dtype == compute_dtype else w2.astype(compute_dtype)
    b1_2d = b1.reshape(1, dim_ff).astype(jnp.float32)
    b2_2d = b2.reshape(1, d_model).astype(jnp.float32)

    scratch_shapes = [pltpu.VMEM((tm, d_model), jnp.float32)] if use_scratch else []

    if weights_resident:
        kernel = functools.partial(_ffn_resident_kernel, tf=tf,
                                   compute_dtype=compute_dtype)
        grid = (Mp // tm,)
        in_specs = [
            pl.BlockSpec((tm, d_model), lambda i: (i, 0)),       # x tile (per i)
            pl.BlockSpec((d_model, dim_ff), lambda i: (0, 0)),   # W1: fetched once
            pl.BlockSpec((1, dim_ff), lambda i: (0, 0)),         # b1: fetched once
            pl.BlockSpec((dim_ff, d_model), lambda i: (0, 0)),   # W2: fetched once
            pl.BlockSpec((1, d_model), lambda i: (0, 0)),        # b2: fetched once
        ]
        out_specs = pl.BlockSpec((tm, d_model), lambda i: (i, 0))
        dims = ("parallel",)
    else:
        kernel = functools.partial(_ffn_streamed_kernel,
                                   compute_dtype=compute_dtype)
        grid = (Mp // tm, dim_ff // tf)
        in_specs = [
            pl.BlockSpec((tm, d_model), lambda i, f: (i, 0)),     # x tile
            pl.BlockSpec((d_model, tf), lambda i, f: (0, f)),     # W1 tile
            pl.BlockSpec((1, tf),       lambda i, f: (0, f)),     # b1 tile
            pl.BlockSpec((tf, d_model), lambda i, f: (f, 0)),     # W2 tile
            pl.BlockSpec((1, d_model),  lambda i, f: (0, 0)),     # b2
        ]
        out_specs = pl.BlockSpec((tm, d_model), lambda i, f: (i, 0))
        dims = ("parallel", "arbitrary")

    out2d = pl.pallas_call(
        kernel,
        out_shape=jax.ShapeDtypeStruct((Mp, d_model), out_dtype),
        grid_spec=pltpu.PrefetchScalarGridSpec(
            num_scalar_prefetch=0,
            grid=grid,
            in_specs=in_specs,
            out_specs=out_specs,
            scratch_shapes=scratch_shapes,
        ),
        compiler_params=pltpu.CompilerParams(
            dimension_semantics=dims,
            vmem_limit_bytes=vmem_limit,
        ),
    )(x2d, w1c, b1_2d, w2c, b2_2d)

    if Mp != M:
        out2d = out2d[:M]
    return out2d.reshape(B, S, d_model)


if __name__ == "__main__":
    # Small shapes consistent with the module (TPU-tile-friendly last dims).
    # M = B*S = 18 exercises the padding path; dim_ff=1024 gives >=1 reduction steps.
    B, S, d_model, dim_ff = 2, 9, 128, 1024

    key = jax.random.PRNGKey(0)
    kx, kw1, kb1, kw2, kb2 = jax.random.split(key, 5)

    x = jax.random.normal(kx, (B, S, d_model), dtype=jnp.float32)

    # Deterministic parameter init (PyTorch-Linear-like uniform bounds).
    lim1 = 1.0 / (d_model ** 0.5)
    lim2 = 1.0 / (dim_ff ** 0.5)
    # Stored transposed vs. PyTorch: W1 = linear_1.weight.T, W2 = linear_2.weight.T
    w1 = jax.random.uniform(kw1, (d_model, dim_ff), jnp.float32, -lim1, lim1)
    b1 = jax.random.uniform(kb1, (dim_ff,),         jnp.float32, -lim1, lim1)
    w2 = jax.random.uniform(kw2, (dim_ff, d_model), jnp.float32, -lim2, lim2)
    b2 = jax.random.uniform(kb2, (d_model,),        jnp.float32, -lim2, lim2)

    # Cast the weights to the compute dtype ONCE at "load time" (not per call).
    w1_bf16 = w1.astype(jnp.bfloat16)
    w2_bf16 = w2.astype(jnp.bfloat16)

    out = feed_forward(x, w1_bf16, b1, w2_bf16, b2)
    out = jax.block_until_ready(out)

    # Pure-JAX reference with the same bf16-operand / f32-accumulate recipe
    # (eval-mode dropout == identity).
    xb = x.reshape(B * S, d_model).astype(jnp.bfloat16)
    h_ref = jnp.maximum(
        jnp.dot(xb, w1_bf16, preferred_element_type=jnp.float32) + b1, 0.0)
    ref2d = jnp.dot(h_ref.astype(jnp.bfloat16), w2_bf16,
                    preferred_element_type=jnp.float32) + b2
    ref = ref2d.reshape(B, S, d_model).astype(x.dtype)

    assert out.shape == (B, S, d_model)
    assert out.dtype == x.dtype
    assert jnp.allclose(out, ref, atol=1e-2, rtol=1e-2), \
        float(jnp.max(jnp.abs(out - ref)))

    # Sanity vs. full-f32 math (looser tolerance: bf16 rounding of operands).
    ref_f32 = jnp.maximum(x @ w1 + b1, 0.0) @ w2 + b2
    assert jnp.allclose(out, ref_f32, atol=5e-2, rtol=5e-2)

    # Also exercise the streamed fallback path (used when W1/W2 exceed VMEM).
    out_streamed = jax.block_until_ready(
        feed_forward(x, w1_bf16, b1, w2_bf16, b2, weights_resident=False))
    assert jnp.allclose(out_streamed, ref, atol=1e-2, rtol=1e-2)

    print("KERNEL_OK")
</pallas_src>

<mosaic_0001>
module attributes {stable_mosaic.version = 11 : i64} {
  func.func @_ffn_resident_kernel(%arg0: i32, %arg1: memref<16x128xf32, #tpu.memory_space<vmem>>, %arg2: memref<128x1024xbf16, #tpu.memory_space<vmem>>, %arg3: memref<1x1024xf32, #tpu.memory_space<vmem>>, %arg4: memref<1024x128xbf16, #tpu.memory_space<vmem>>, %arg5: memref<1x128xf32, #tpu.memory_space<vmem>>, %arg6: memref<16x128xf32, #tpu.memory_space<vmem>>) attributes {dimension_semantics = [#tpu.dimension_semantics<parallel>], iteration_bounds = array<i64: 2>, scalar_prefetch = 0 : i64, scratch_operands = 0 : i64, tpu.core_type = #tpu.core_type<tc>, window_params = [{transform_indices = @transform_0, window_bounds = array<i64: 16, 128>}, {pipeline_mode = #tpu.pipeline_mode<synchronous>, transform_indices = @transform_1, window_bounds = array<i64: 128, 1024>}, {pipeline_mode = #tpu.pipeline_mode<synchronous>, transform_indices = @transform_2, window_bounds = array<i64: 1, 1024>}, {pipeline_mode = #tpu.pipeline_mode<synchronous>, transform_indices = @transform_3, window_bounds = array<i64: 1024, 128>}, {pipeline_mode = #tpu.pipeline_mode<synchronous>, transform_indices = @transform_4, window_bounds = array<i64: 1, 128>}, {transform_indices = @transform_5, window_bounds = array<i64: 16, 128>}]} {
    %c0 = arith.constant 0 : index
    %c0_0 = arith.constant 0 : index
    %0 = vector.load %arg1[%c0, %c0_0] : memref<16x128xf32, #tpu.memory_space<vmem>>, vector<16x128xf32>
    %1 = arith.truncf %0 : vector<16x128xf32> to vector<16x128xbf16>
    %c0_1 = arith.constant 0 : index
    %c0_2 = arith.constant 0 : index
    %2 = vector.load %arg5[%c0_1, %c0_2] : memref<1x128xf32, #tpu.memory_space<vmem>>, vector<1x128xf32>
    %3 = vector.shape_cast %2 : vector<1x128xf32> to vector<1x128xf32>
    %4 = vector.broadcast %3 : vector<1x128xf32> to vector<16x128xf32>
    %c0_3 = arith.constant 0 : index
    %c0_4 = arith.constant 0 : index
    %5 = vector.load %arg6[%c0_3, %c0_4] : memref<16x128xf32, #tpu.memory_space<vmem>>, vector<16x128xf32>
    tpu.vector_store %arg6[%c0_3, %c0_4], %4 {strides = array<i32>} : memref<16x128xf32, #tpu.memory_space<vmem>>, vector<16x128xf32>,
    %c0_5 = arith.constant 0 : index
    %c0_6 = arith.constant 0 : index
    %6 = vector.load %arg2[%c0_5, %c0_6] : memref<128x1024xbf16, #tpu.memory_space<vmem>>, vector<128x512xbf16>
    %cst = arith.constant dense<0.000000e+00> : vector<16x512xf32>
    %7 = tpu.matmul %1, %6, %cst {dimension_numbers = #tpu.dot_dimension_numbers<[1], [0], [0], [1], [0, 0, 1, 1], [], []>} : vector<16x128xbf16>, vector<128x512xbf16>, vector<16x512xf32> -> vector<16x512xf32>
    %c0_7 = arith.constant 0 : index
    %c0_8 = arith.constant 0 : index
    %8 = vector.load %arg3[%c0_7, %c0_8] : memref<1x1024xf32, #tpu.memory_space<vmem>>, vector<1x512xf32>
    %9 = vector.broadcast %8 : vector<1x512xf32> to vector<16x512xf32>
    %10 = arith.addf %7, %9 : vector<16x512xf32>
    %cst_9 = arith.constant 0.000000e+00 : f32
    %11 = vector.broadcast %cst_9 : f32 to vector<16x512xf32>
    %12 = arith.maximumf %10, %11 : vector<16x512xf32>
    %c0_10 = arith.constant 0 : index
    %c0_11 = arith.constant 0 : index
    %13 = vector.load %arg6[%c0_10, %c0_11] : memref<16x128xf32, #tpu.memory_space<vmem>>, vector<16x128xf32>
    %14 = arith.truncf %12 : vector<16x512xf32> to vector<16x512xbf16>
    %c0_12 = arith.constant 0 : index
    %c0_13 = arith.constant 0 : index
    %15 = vector.load %arg4[%c0_12, %c0_13] : memref<1024x128xbf16, #tpu.memory_space<vmem>>, vector<512x128xbf16>
    %cst_14 = arith.constant dense<0.000000e+00> : vector<16x128xf32>
    %16 = tpu.matmul %14, %15, %cst_14 {dimension_numbers = #tpu.dot_dimension_numbers<[1], [0], [0], [1], [0, 0, 1, 1], [], []>} : vector<16x512xbf16>, vector<512x128xbf16>, vector<16x128xf32> -> vector<16x128xf32>
    %17 = arith.addf %13, %16 : vector<16x128xf32>
    %c0_15 = arith.constant 0 : index
    %c0_16 = arith.constant 0 : index
    %18 = vector.load %arg6[%c0_15, %c0_16] : memref<16x128xf32, #tpu.memory_space<vmem>>, vector<16x128xf32>
    tpu.vector_store %arg6[%c0_15, %c0_16], %17 {strides = array<i32>} : memref<16x128xf32, #tpu.memory_space<vmem>>, vector<16x128xf32>,
    %c0_17 = arith.constant 0 : index
    %c512 = arith.constant 512 : index
    %19 = vector.load %arg2[%c0_17, %c512] : memref<128x1024xbf16, #tpu.memory_space<vmem>>, vector<128x512xbf16>
    %cst_18 = arith.constant dense<0.000000e+00> : vector<16x512xf32>
    %20 = tpu.matmul %1, %19, %cst_18 {dimension_numbers = #tpu.dot_dimension_numbers<[1], [0], [0], [1], [0, 0, 1, 1], [], []>} : vector<16x128xbf16>, vector<128x512xbf16>, vector<16x512xf32> -> vector<16x512xf32>
    %c0_19 = arith.constant 0 : index
    %c512_20 = arith.constant 512 : index
    %21 = vector.load %arg3[%c0_19, %c512_20] : memref<1x1024xf32, #tpu.memory_space<vmem>>, vector<1x512xf32>
    %22 = vector.broadcast %21 : vector<1x512xf32> to vector<16x512xf32>
    %23 = arith.addf %20, %22 : vector<16x512xf32>
    %cst_21 = arith.constant 0.000000e+00 : f32
    %24 = vector.broadcast %cst_21 : f32 to vector<16x512xf32>
    %25 = arith.maximumf %23, %24 : vector<16x512xf32>
    %c0_22 = arith.constant 0 : index
    %c0_23 = arith.constant 0 : index
    %26 = vector.load %arg6[%c0_22, %c0_23] : memref<16x128xf32, #tpu.memory_space<vmem>>, vector<16x128xf32>
    %27 = arith.truncf %25 : vector<16x512xf32> to vector<16x512xbf16>
    %c512_24 = arith.constant 512 : index
    %c0_25 = arith.constant 0 : index
    %28 = vector.load %arg4[%c512_24, %c0_25] : memref<1024x128xbf16, #tpu.memory_space<vmem>>, vector<512x128xbf16>
    %cst_26 = arith.constant dense<0.000000e+00> : vector<16x128xf32>
    %29 = tpu.matmul %27, %28, %cst_26 {dimension_numbers = #tpu.dot_dimension_numbers<[1], [0], [0], [1], [0, 0, 1, 1], [], []>} : vector<16x512xbf16>, vector<512x128xbf16>, vector<16x128xf32> -> vector<16x128xf32>
    %30 = arith.addf %26, %29 : vector<16x128xf32>
    %c0_27 = arith.constant 0 : index
    %c0_28 = arith.constant 0 : index
    %31 = vector.load %arg6[%c0_27, %c0_28] : memref<16x128xf32, #tpu.memory_space<vmem>>, vector<16x128xf32>
    tpu.vector_store %arg6[%c0_27, %c0_28], %30 {strides = array<i32>} : memref<16x128xf32, #tpu.memory_space<vmem>>, vector<16x128xf32>,
    return
  }
  func.func @transform_0(%arg0: i32) -> (i32, i32) {
    %c0_i32 = arith.constant 0 : i32
    %c0_i32_0 = arith.constant 0 : i32
    return %arg0, %c0_i32 : i32, i32
  }
  func.func @transform_1(%arg0: i32) -> (i32, i32) {
    %c0_i32 = arith.constant 0 : i32
    %c0_i32_0 = arith.constant 0 : i32
    %c0_i32_1 = arith.constant 0 : i32
    return %c0_i32, %c0_i32_0 : i32, i32
  }
  func.func @transform_2(%arg0: i32) -> (i32, i32) {
    %c0_i32 = arith.constant 0 : i32
    %c0_i32_0 = arith.constant 0 : i32
    %c0_i32_1 = arith.constant 0 : i32
    return %c0_i32, %c0_i32_0 : i32, i32
  }
  func.func @transform_3(%arg0: i32) -> (i32, i32) {
    %c0_i32 = arith.constant 0 : i32
    %c0_i32_0 = arith.constant 0 : i32
    %c0_i32_1 = arith.constant 0 : i32
    return %c0_i32, %c0_i32_0 : i32, i32
  }
  func.func @transform_4(%arg0: i32) -> (i32, i32) {
    %c0_i32 = arith.constant 0 : i32
    %c0_i32_0 = arith.constant 0 : i32
    %c0_i32_1 = arith.constant 0 : i32
    return %c0_i32, %c0_i32_0 : i32, i32
  }
  func.func @transform_5(%arg0: i32) -> (i32, i32) {
    %c0_i32 = arith.constant 0 : i32
    %c0_i32_0 = arith.constant 0 : i32
    return %arg0, %c0_i32 : i32, i32
  }
}

</mosaic_0001>

<llo_original>
// kernel: tpu_custom_call.1
$region0: #{tpu_custom_call.1}
  #allocation0 [shape = 'u32[]', space=smem, size = 0x4, offset = 0x4, fixed_abs, tag = 'smem constant byte address 0x4 - core index']
  #allocation1 [shape = 'u32[144,128]{1,0:T(1,128)}', space=vmem, size = 0x12000, scoped, tag = 'internal scratch']
  %s0 = inlined_call_operand.hbm [shape: f32[32,128], index: 0, kind: input, shape index: {}]
  %s1 = inlined_call_operand.hbm [shape: bf16[128,1024], index: 1, kind: input, shape index: {}]
  %s2 = inlined_call_operand.hbm [shape: f32[1,1024], index: 2, kind: input, shape index: {}]
  %s3 = inlined_call_operand.hbm [shape: bf16[1024,128], index: 3, kind: input, shape index: {}]
  %s4 = inlined_call_operand.vmem [shape: f32[1,128], index: 4, kind: input, shape index: {}]
  %s5 = inlined_call_operand.hbm [shape: f32[32,128], index: 5, kind: output, shape index: {}]
  %s6 = sld [smem:[#allocation0]]
  $region69: #{tpu_custom_call.1} parent=0
    _
  %s8 = ssub.s32 1, %s6
  %s9 = scalar_select 0, %s8, %s6
  $region1: #{tpu_custom_call.1} parent=0
    #allocation2 [shape = 'u8[16384]{0}', space=vmem, size = 0x4000, scoped, tag = 'input window, operand 0']
    #allocation3 [shape = 's32[2]{0}', space=sflag, size = 0x8, scoped, tag = 'scoped memory for tpu_custom_call.1']
    #allocation4 [shape = 's32[2]{0}', space=sflag, size = 0x8, scoped, tag = 'scoped memory for tpu_custom_call.1']
    #allocation5 [shape = 'u8[262144]{0}', space=vmem, size = 0x40000, scoped, tag = 'input window, operand 1, single buffered']
    #allocation6 [shape = 's32[1]{0}', space=sflag, size = 0x4, scoped, tag = 'scoped memory for tpu_custom_call.1']
    #allocation7 [shape = 'u8[4096]{0}', space=vmem, size = 0x1000, scoped, tag = 'input window, operand 2, single buffered']
    #allocation8 [shape = 'u8[262144]{0}', space=vmem, size = 0x40000, scoped, tag = 'input window, operand 3, single buffered']
    #allocation9 [shape = 's32[1]{0}', space=sflag, size = 0x4, scoped, tag = 'scoped memory for tpu_custom_call.1']
    #allocation10 [shape = 'u8[16384]{0}', space=vmem, size = 0x4000, scoped, tag = 'output window, operand 0']
    %10 = vsyncpa [#allocation3], 0
    %s11 = scalar_lea.sflag [#allocation3], 1
    %12 = vsyncpa %s11, 0
    %13 = vsyncpa [#allocation6], 0
    %14 = vsyncpa [#allocation9], 0
    %15 = vsyncpa [#allocation4], 0
    %s16 = scalar_lea.sflag [#allocation4], 1
    %17 = vsyncpa %s16, 0
    loop: start=0, step=1, limit=4
    $region2: #{tpu_custom_call.1} parent=1 // loop_pre_header
      _
    $region3: #{tpu_custom_call.1} parent=1 // loop_header
      %s19 = sphi 0, %s23
      %p20 = scmp.ge.s32.totalorder %s19, 4
      %s29 = sphi 0, %s31
      %s32 = sphi 0, %s29
      %s33 = sphi 0, %s32
      %s49 = sphi 0, %s33
      %s53 = sphi 0, %s53
      %s55 = sphi 0, %s53
      %s56 = sphi 0, %s55
      %s70 = sphi 0, %s56
      %s74 = sphi 0, %s74
      %s76 = sphi 0, %s74
      %s77 = sphi 0, %s76
      %s91 = sphi 0, %s77
      %s95 = sphi 0, %s95
      %s97 = sphi 0, %s95
      %s98 = sphi 0, %s97
      %s112 = sphi 0, %s98
      %s116 = sphi 0, %s116
      %s118 = sphi 0, %s116
      %s119 = sphi 0, %s118
      %s133 = sphi 0, %s119
      %s139 = sphi 0, %s141
      %s142 = sphi 0, %s139
      %s143 = sphi 0, %s142
      %s159 = sphi 0, %s143
    $region4: #{tpu_custom_call.1} parent=1 // loop_header_branch
      %22 = sbr.rel (%p20) target = $region8
    $region5: #{tpu_custom_call.1} parent=1 // loop_body
      %s24 = ssub.s32 %s19, 1
      %s25 = ssub.s32 %s19, 2
      %s26 = sadd.s32 %s19, 1
      %s27 = ssub.s32 %s19, %s26
      %p28 = scmp.eq.s32.totalorder %s27, 0
      %s30 = sadd.s32 %s29, 1
      %s31 = scalar_select %p28, %s29, %s30
      %p34 = pneg %p28
      %p35 = scmp.eq.s32.totalorder %s19, 1
      %p36 = por %p34, %p35
      %p37 = scmp.ne.s32.totalorder %s29, %s32
      %p38 = scmp.eq.s32.totalorder %s19, 0
      %p39 = por %p37, %p38
      %p40 = scmp.ne.s32.totalorder %s29, %s32
      %p41 = scmp.eq.s32.totalorder %s24, 1
      %p42 = por %p40, %p41
      %p43 = scmp.ne.s32.totalorder %s32, %s33
      %p44 = scmp.eq.s32.totalorder %s24, 0
      %p45 = por %p43, %p44
      %p46 = scmp.ne.s32.totalorder %s32, %s33
      %p47 = scmp.eq.s32.totalorder %s25, 1
      %p48 = por %p46, %p47
      %p50 = scmp.ne.s32.totalorder %s33, %s49
      %p51 = scmp.eq.s32.totalorder %s25, 0
      %p52 = por %p50, %p51
      %s54 = sadd.s32 %s53, 1
      %p57 = scmp.eq.s32.totalorder %s19, 1
      %p58 = scmp.ne.s32.totalorder %s53, %s55
      %p59 = scmp.eq.s32.totalorder %s19, 0
      %p60 = por %p58, %p59
      %p61 = scmp.ne.s32.totalorder %s53, %s55
      %p62 = scmp.eq.s32.totalorder %s24, 1
      %p63 = por %p61, %p62
      %p64 = scmp.ne.s32.totalorder %s55, %s56
      %p65 = scmp.eq.s32.totalorder %s24, 0
      %p66 = por %p64, %p65
      %p67 = scmp.ne.s32.totalorder %s55, %s56
      %p68 = scmp.eq.s32.totalorder %s25, 1
      %p69 = por %p67, %p68
      %p71 = scmp.ne.s32.totalorder %s56, %s70
      %p72 = scmp.eq.s32.totalorder %s25, 0
      %p73 = por %p71, %p72
      %s75 = sadd.s32 %s74, 1
      %p78 = scmp.eq.s32.totalorder %s19, 1
      %p79 = scmp.ne.s32.totalorder %s74, %s76
      %p80 = scmp.eq.s32.totalorder %s19, 0
      %p81 = por %p79, %p80
      %p82 = scmp.ne.s32.totalorder %s74, %s76
      %p83 = scmp.eq.s32.totalorder %s24, 1
      %p84 = por %p82, %p83
      %p85 = scmp.ne.s32.totalorder %s76, %s77
      %p86 = scmp.eq.s32.totalorder %s24, 0
      %p87 = por %p85, %p86
      %p88 = scmp.ne.s32.totalorder %s76, %s77
      %p89 = scmp.eq.s32.totalorder %s25, 1
      %p90 = por %p88, %p89
      %p92 = scmp.ne.s32.totalorder %s77, %s91
      %p93 = scmp.eq.s32.totalorder %s25, 0
      %p94 = por %p92, %p93
      %s96 = sadd.s32 %s95, 1
      %p99 = scmp.eq.s32.totalorder %s19, 1
      %p100 = scmp.ne.s32.totalorder %s95, %s97
      %p101 = scmp.eq.s32.totalorder %s19, 0
      %p102 = por %p100, %p101
      %p103 = scmp.ne.s32.totalorder %s95, %s97
      %p104 = scmp.eq.s32.totalorder %s24, 1
      %p105 = por %p103, %p104
      %p106 = scmp.ne.s32.totalorder %s97, %s98
      %p107 = scmp.eq.s32.totalorder %s24, 0
      %p108 = por %p106, %p107
      %p109 = scmp.ne.s32.totalorder %s97, %s98
      %p110 = scmp.eq.s32.totalorder %s25, 1
      %p111 = por %p109, %p110
      %p113 = scmp.ne.s32.totalorder %s98, %s112
      %p114 = scmp.eq.s32.totalorder %s25, 0
      %p115 = por %p113, %p114
      %s117 = sadd.s32 %s116, 1
      %p120 = scmp.eq.s32.totalorder %s19, 1
      %p121 = scmp.ne.s32.totalorder %s116, %s118
      %p122 = scmp.eq.s32.totalorder %s19, 0
      %p123 = por %p121, %p122
      %p124 = scmp.ne.s32.totalorder %s116, %s118
      %p125 = scmp.eq.s32.totalorder %s24, 1
      %p126 = por %p124, %p125
      %p127 = scmp.ne.s32.totalorder %s118, %s119
      %p128 = scmp.eq.s32.totalorder %s24, 0
      %p129 = por %p127, %p128
      %p130 = scmp.ne.s32.totalorder %s118, %s119
      %p131 = scmp.eq.s32.totalorder %s25, 1
      %p132 = por %p130, %p131
      %p134 = scmp.ne.s32.totalorder %s119, %s133
      %p135 = scmp.eq.s32.totalorder %s25, 0
      %p136 = por %p134, %p135
      %s137 = ssub.s32 %s19, %s26
      %p138 = scmp.eq.s32.totalorder %s137, 0
      %s140 = sadd.s32 %s139, 1
      %s141 = scalar_select %p138, %s139, %s140
      %p144 = pneg %p138
      %p145 = scmp.eq.s32.totalorder %s19, 1
      %p146 = por %p144, %p145
      %p147 = scmp.ne.s32.totalorder %s139, %s142
      %p148 = scmp.eq.s32.totalorder %s19, 0
      %p149 = por %p147, %p148
      %p150 = scmp.ne.s32.totalorder %s139, %s142
      %p151 = scmp.eq.s32.totalorder %s24, 1
      %p152 = por %p150, %p151
      %p153 = scmp.ne.s32.totalorder %s142, %s143
      %p154 = scmp.eq.s32.totalorder %s24, 0
      %p155 = por %p153, %p154
      %p156 = scmp.ne.s32.totalorder %s142, %s143
      %p157 = scmp.eq.s32.totalorder %s25, 1
      %p158 = por %p156, %p157
      %p160 = scmp.ne.s32.totalorder %s143, %s159
      %p161 = scmp.eq.s32.totalorder %s25, 0
      %p162 = por %p160, %p161
      %p163 = scmp.le.s32.totalorder 1, %s19
      %p164 = scmp.lt.s32.totalorder %s19, 3
      %p165 = pnand %p163, %p164
      %p166 = pneg %p165
      // Predicated region
      $region9: #{tpu_custom_call.1} parent=5 // pred_check
        _
      $region10: #{tpu_custom_call.1} parent=5 // pred_check_branch
        %168 = sbr.rel (%p165) target = $region12
      $region11: #{tpu_custom_call.1} parent=5 // pred_region
        %s169 = ssub.s32 %s19, 1
        // Predicated region
        $region13: #{tpu_custom_call.1} parent=11 // pred_check
          %p170 = pneg %p66
        $region14: #{tpu_custom_call.1} parent=11 // pred_check_branch
          %172 = sbr.rel (%p170) target = $region16
        $region15: #{tpu_custom_call.1} parent=11 // pred_region
          %s174 = ssub.s32 8192, 8192
          %175 = vsyncadd [#allocation6], %s174
          %s176 = sshll.u32 [#allocation5], 4
          %s177 = int_to_ptr.vmem [resolvable:$true] %s176
          %182 = dma.hbm_to_vmem [thread:$0]  %s1, 8192, %s177, [#allocation6], 512, 512, 32
        $region16: #{tpu_custom_call.1} parent=11 // pred_fallthru
          _
        // Predicated region
        $region17: #{tpu_custom_call.1} parent=11 // pred_check
          %p183 = pneg %p87
        $region18: #{tpu_custom_call.1} parent=11 // pred_check_branch
          %185 = sbr.rel (%p183) target = $region20
        $region19: #{tpu_custom_call.1} parent=11 // pred_region
          %s187 = ssub.s32 128, 128
          %188 = vsyncadd [#allocation6], %s187
          %s190 = sshll.u32 [#allocation7], 4
          %s191 = int_to_ptr.vmem [resolvable:$true] %s190
          %193 = dma.hbm_to_vmem [thread:$0]  %s2, 128, %s191, [#allocation6]
        $region20: #{tpu_custom_call.1} parent=11 // pred_fallthru
          _
        // Predicated region
        $region21: #{tpu_custom_call.1} parent=11 // pred_check
          %p194 = pneg %p108
        $region22: #{tpu_custom_call.1} parent=11 // pred_check_branch
          %196 = sbr.rel (%p194) target = $region24
        $region23: #{tpu_custom_call.1} parent=11 // pred_region
          %s198 = ssub.s32 8192, 8192
          %199 = vsyncadd [#allocation9], %s198
          %s200 = sshll.u32 [#allocation8], 4
          %s201 = int_to_ptr.vmem [resolvable:$true] %s200
          %206 = dma.hbm_to_vmem [thread:$0]  %s3, 8192, %s201, [#allocation9], 64, 64, 4
        $region24: #{tpu_custom_call.1} parent=11 // pred_fallthru
          _
        // Predicated region
        $region25: #{tpu_custom_call.1} parent=11 // pred_check
          %p207 = pneg %p129
        $region26: #{tpu_custom_call.1} parent=11 // pred_check_branch
          %209 = sbr.rel (%p207) target = $region28
        $region27: #{tpu_custom_call.1} parent=11 // pred_region
          _
        $region28: #{tpu_custom_call.1} parent=11 // pred_fallthru
          _
      $region12: #{tpu_custom_call.1} parent=5 // pred_fallthru
        _
      %p210 = scmp.lt.s32.totalorder %s19, 2
      // Predicated region
      $region29: #{tpu_custom_call.1} parent=5 // pred_check
        %p211 = pneg %p210
      $region30: #{tpu_custom_call.1} parent=5 // pred_check_branch
        %213 = sbr.rel (%p211) target = $region32
      $region31: #{tpu_custom_call.1} parent=5 // pred_region
        // Predicated region
        $region33: #{tpu_custom_call.1} parent=31 // pred_check
          %p214 = pneg %p39
        $region34: #{tpu_custom_call.1} parent=31 // pred_check_branch
          %216 = sbr.rel (%p214) target = $region36
        $region35: #{tpu_custom_call.1} parent=31 // pred_region
          %s217 = sand.u32 %s29, 1
          %s218 = scalar_lea.sflag [#allocation3], %s217
          %s219 = sand.u32 %s29, 1
          %s220 = smul.addr %s219, 16
          %s221 = scalar_lea.vmem [#allocation2], %s220
          %s222 = smul.u32 2, %s19
          %s224 = ssub.s32 256, 256
          %225 = vsyncadd %s218, %s224
          %s226 = smul.addr %s222, 128
          %s227 = scalar_lea.hbm %s0, %s226
          %s228 = sshll.u32 %s221, 4
          %s229 = int_to_ptr.vmem [resolvable:$true] %s228
          %234 = dma.hbm_to_vmem [thread:$0]  %s227, 256, %s229, %s218, 128, 128, 8
        $region36: #{tpu_custom_call.1} parent=31 // pred_fallthru
          _
      $region32: #{tpu_custom_call.1} parent=5 // pred_fallthru
        _
      %p235 = scmp.le.s32.totalorder 1, %s19
      %p236 = scmp.lt.s32.totalorder %s19, 3
      %p237 = pnand %p235, %p236
      %p238 = pneg %p237
      // Predicated region
      $region37: #{tpu_custom_call.1} parent=5 // pred_check
        _
      $region38: #{tpu_custom_call.1} parent=5 // pred_check_branch
        %240 = sbr.rel (%p237) target = $region40
      $region39: #{tpu_custom_call.1} parent=5 // pred_region
        %s241 = ssub.s32 %s19, 1
        %s242 = sand.u32 %s32, 1
        %s243 = scalar_lea.sflag [#allocation3], %s242
        %s244 = sand.u32 %s32, 1
        %s245 = smul.addr %s244, 16
        %s246 = scalar_lea.vmem [#allocation2], %s245
        // Predicated region
        $region41: #{tpu_custom_call.1} parent=39 // pred_check
          %p247 = pneg %p45
        $region42: #{tpu_custom_call.1} parent=39 // pred_check_branch
          %249 = sbr.rel (%p247) target = $region44
        $region43: #{tpu_custom_call.1} parent=39 // pred_region
          %250 = dma.done %s243, 256
        $region44: #{tpu_custom_call.1} parent=39 // pred_fallthru
          _
        // Predicated region
        $region45: #{tpu_custom_call.1} parent=39 // pred_check
          %p251 = pneg %p66
        $region46: #{tpu_custom_call.1} parent=39 // pred_check_branch
          %253 = sbr.rel (%p251) target = $region48
        $region47: #{tpu_custom_call.1} parent=39 // pred_region
          %254 = dma.done [#allocation6], 8192
        $region48: #{tpu_custom_call.1} parent=39 // pred_fallthru
          _
        // Predicated region
        $region49: #{tpu_custom_call.1} parent=39 // pred_check
          %p255 = pneg %p87
        $region50: #{tpu_custom_call.1} parent=39 // pred_check_branch
          %257 = sbr.rel (%p255) target = $region52
        $region51: #{tpu_custom_call.1} parent=39 // pred_region
          %258 = dma.done [#allocation6], 128
        $region52: #{tpu_custom_call.1} parent=39 // pred_fallthru
          _
        // Predicated region
        $region53: #{tpu_custom_call.1} parent=39 // pred_check
          %p259 = pneg %p108
        $region54: #{tpu_custom_call.1} parent=39 // pred_check_branch
          %261 = sbr.rel (%p259) target = $region56
        $region55: #{tpu_custom_call.1} parent=39 // pred_region
          %262 = dma.done [#allocation9], 8192
        $region56: #{tpu_custom_call.1} parent=39 // pred_fallthru
          _
        %s263 = sand.u32 %s32, 1
        %s264 = scalar_lea.sflag [#allocation3], %s263
        %s265 = sand.u32 %s32, 1
        %s266 = smul.addr %s265, 16
        %s267 = scalar_lea.vmem [#allocation2], %s266
        %p268 = pneg %p45
        %p269 = pneg %p42
        %p270 = pneg %p66
        %p271 = pneg %p63
        %p272 = pneg %p87
        %p273 = pneg %p84
        %p274 = pneg %p108
        %p275 = pneg %p105
        %p276 = pneg %p129
        %p277 = pneg %p126
        %p278 = pneg %p155
        %p279 = pneg %p152
        %s280 = sand.u32 %s142, 1
        %s281 = scalar_lea.sflag [#allocation4], %s280
        %s282 = sand.u32 %s142, 1
        %s283 = smul.addr %s282, 16
        %s284 = scalar_lea.vmem [#allocation10], %s283
        %s285 = smul.u32 2, %s24
        %s286 = smul.u32 2, %s24
        %v288 = vld [vmem:[%s246] sm:$0xff]
        %v289 = vld [vmem:[%s246 + $0x8] sm:$0xff]
        %v290 = vpack.c.bf16 %v289, %v288
        %v291 = vld [vmem:[%s4] sm:$0x1]
        %v293 = vlaneseq
        %v294 = vshrl.u32 %v293, 7
        %v295 = vsub.s32 0, %v294
        %v296 = vrot.slane %v291, %v295
        %298 = vst [vmem:[%s284] sm:$0xff] %v296
        %299 = vst [vmem:[%s284 + $0x8] sm:$0xff] %v296
        %v300 = vld [vmem:[#allocation5] sm:$0xff]
        %v301 = vld [vmem:[#allocation5 + $0x8] sm:$0xff]
        %v302 = vld [vmem:[#allocation5 + $0x20] sm:$0xff]
        %v303 = vld [vmem:[#allocation5 + $0x28] sm:$0xff]
        %v304 = vld [vmem:[#allocation5 + $0x40] sm:$0xff]
        %v305 = vld [vmem:[#allocation5 + $0x48] sm:$0xff]
        %v306 = vld [vmem:[#allocation5 + $0x60] sm:$0xff]
        %v307 = vld [vmem:[#allocation5 + $0x68] sm:$0xff]
        %v308 = vld [vmem:[#allocation5 + $0x80] sm:$0xff]
        %v309 = vld [vmem:[#allocation5 + $0x88] sm:$0xff]
        %v310 = vld [vmem:[#allocation5 + $0xa0] sm:$0xff]
        %v311 = vld [vmem:[#allocation5 + $0xa8] sm:$0xff]
        %v312 = vld [vmem:[#allocation5 + $0xc0] sm:$0xff]
        %v313 = vld [vmem:[#allocation5 + $0xc8] sm:$0xff]
        %v314 = vld [vmem:[#allocation5 + $0xe0] sm:$0xff]
        %v315 = vld [vmem:[#allocation5 + $0xe8] sm:$0xff]
        %v316 = vld [vmem:[#allocation5 + $0x100] sm:$0xff]
        %v317 = vld [vmem:[#allocation5 + $0x108] sm:$0xff]
        %v318 = vld [vmem:[#allocation5 + $0x120] sm:$0xff]
        %v319 = vld [vmem:[#allocation5 + $0x128] sm:$0xff]
        %v320 = vld [vmem:[#allocation5 + $0x140] sm:$0xff]
        %v321 = vld [vmem:[#allocation5 + $0x148] sm:$0xff]
        %v322 = vld [vmem:[#allocation5 + $0x160] sm:$0xff]
        %v323 = vld [vmem:[#allocation5 + $0x168] sm:$0xff]
        %v324 = vld [vmem:[#allocation5 + $0x180] sm:$0xff]
        %v325 = vld [vmem:[#allocation5 + $0x188] sm:$0xff]
        %v326 = vld [vmem:[#allocation5 + $0x1a0] sm:$0xff]
        %v327 = vld [vmem:[#allocation5 + $0x1a8] sm:$0xff]
        %v328 = vld [vmem:[#allocation5 + $0x1c0] sm:$0xff]
        %v329 = vld [vmem:[#allocation5 + $0x1c8] sm:$0xff]
        %v330 = vld [vmem:[#allocation5 + $0x1e0] sm:$0xff]
        %v331 = vld [vmem:[#allocation5 + $0x1e8] sm:$0xff]
        %v332 = vld [vmem:[#allocation7] sm:$0xf]
        %v334 = vlaneseq
        %v335 = vshrl.u32 %v334, 7
        %v336 = vsub.s32 0, %v335
        %v337 = vrot.slane %v332, %v336
        %v338 = vlaneseq
        %v339 = vshrl.u32 %v338, 7
        %v340 = vsub.s32 1, %v339
        %v341 = vrot.slane %v332, %v340
        %v342 = vlaneseq
        %v343 = vshrl.u32 %v342, 7
        %v344 = vsub.s32 2, %v343
        %v345 = vrot.slane %v332, %v344
        %v346 = vlaneseq
        %v347 = vshrl.u32 %v346, 7
        %v348 = vsub.s32 3, %v347
        %v349 = vrot.slane %v332, %v348
        %v386 = vunpack.c.l.b16 %v300
        %v387 = vunpack.c.h.b16 %v300
        %v388 = vunpack.c.l.b16 %v301
        %v389 = vunpack.c.h.b16 %v301
        %v390 = vunpack.c.l.b16 %v302
        %v391 = vunpack.c.h.b16 %v302
        %v392 = vunpack.c.l.b16 %v303
        %v393 = vunpack.c.h.b16 %v303
        %v394 = vunpack.c.l.b16 %v304
        %v395 = vunpack.c.h.b16 %v304
        %v396 = vunpack.c.l.b16 %v305
        %v397 = vunpack.c.h.b16 %v305
        %v398 = vunpack.c.l.b16 %v306
        %v399 = vunpack.c.h.b16 %v306
        %v400 = vunpack.c.l.b16 %v307
        %v401 = vunpack.c.h.b16 %v307
        %v402 = vunpack.c.l.b16 %v308
        %v403 = vunpack.c.h.b16 %v308
        %v404 = vunpack.c.l.b16 %v309
        %v405 = vunpack.c.h.b16 %v309
        %v406 = vunpack.c.l.b16 %v310
        %v407 = vunpack.c.h.b16 %v310
        %v408 = vunpack.c.l.b16 %v311
        %v409 = vunpack.c.h.b16 %v311
        %v410 = vunpack.c.l.b16 %v312
        %v411 = vunpack.c.h.b16 %v312
        %v412 = vunpack.c.l.b16 %v313
        %v413 = vunpack.c.h.b16 %v313
        %v414 = vunpack.c.l.b16 %v314
        %v415 = vunpack.c.h.b16 %v314
        %v416 = vunpack.c.l.b16 %v315
        %v417 = vunpack.c.h.b16 %v315
        %v418 = vunpack.c.l.b16 %v316
        %v419 = vunpack.c.h.b16 %v316
        %v420 = vunpack.c.l.b16 %v317
        %v421 = vunpack.c.h.b16 %v317
        %v422 = vunpack.c.l.b16 %v318
        %v423 = vunpack.c.h.b16 %v318
        %v424 = vunpack.c.l.b16 %v319
        %v425 = vunpack.c.h.b16 %v319
        %v426 = vunpack.c.l.b16 %v320
        %v427 = vunpack.c.h.b16 %v320
        %v428 = vunpack.c.l.b16 %v321
        %v429 = vunpack.c.h.b16 %v321
        %v430 = vunpack.c.l.b16 %v322
        %v431 = vunpack.c.h.b16 %v322
        %v432 = vunpack.c.l.b16 %v323
        %v433 = vunpack.c.h.b16 %v323
        %v434 = vunpack.c.l.b16 %v324
        %v435 = vunpack.c.h.b16 %v324
        %v436 = vunpack.c.l.b16 %v325
        %v437 = vunpack.c.h.b16 %v325
        %v438 = vunpack.c.l.b16 %v326
        %v439 = vunpack.c.h.b16 %v326
        %v440 = vunpack.c.l.b16 %v327
        %v441 = vunpack.c.h.b16 %v327
        %v442 = vunpack.c.l.b16 %v328
        %v443 = vunpack.c.h.b16 %v328
        %v444 = vunpack.c.l.b16 %v329
        %v445 = vunpack.c.h.b16 %v329
        %v446 = vunpack.c.l.b16 %v330
        %v447 = vunpack.c.h.b16 %v330
        %v448 = vunpack.c.l.b16 %v331
        %v449 = vunpack.c.h.b16 %v331
        %v450 = vpack.c.b16 %v390, %v386
        %v451 = vpack.c.b16 %v391, %v387
        %v452 = vpack.c.b16 %v392, %v388
        %v453 = vpack.c.b16 %v393, %v389
        %v454 = vpack.c.b16 %v398, %v394
        %v455 = vpack.c.b16 %v399, %v395
        %v456 = vpack.c.b16 %v400, %v396
        %v457 = vpack.c.b16 %v401, %v397
        %v458 = vpack.c.b16 %v406, %v402
        %v459 = vpack.c.b16 %v407, %v403
        %v460 = vpack.c.b16 %v408, %v404
        %v461 = vpack.c.b16 %v409, %v405
        %v462 = vpack.c.b16 %v414, %v410
        %v463 = vpack.c.b16 %v415, %v411
        %v464 = vpack.c.b16 %v416, %v412
        %v465 = vpack.c.b16 %v417, %v413
        %v466 = vpack.c.b16 %v422, %v418
        %v467 = vpack.c.b16 %v423, %v419
        %v468 = vpack.c.b16 %v424, %v420
        %v469 = vpack.c.b16 %v425, %v421
        %v470 = vpack.c.b16 %v430, %v426
        %v471 = vpack.c.b16 %v431, %v427
        %v472 = vpack.c.b16 %v432, %v428
        %v473 = vpack.c.b16 %v433, %v429
        %v474 = vpack.c.b16 %v438, %v434
        %v475 = vpack.c.b16 %v439, %v435
        %v476 = vpack.c.b16 %v440, %v436
        %v477 = vpack.c.b16 %v441, %v437
        %v478 = vpack.c.b16 %v446, %v442
        %v479 = vpack.c.b16 %v447, %v443
        %v480 = vpack.c.b16 %v448, %v444
        %v481 = vpack.c.b16 %v449, %v445
        %514 = vmatprep.subr.bf16.mxu0 %v451
        %515 = vmatpush1.bf16.msra.mxu0 %v450
        %516 = vmatprep.subr.bf16.mxu0 %v455
        %517 = vmatpush1.bf16.msra.mxu0 %v454
        %518 = vmatprep.subr.bf16.mxu0 %v459
        %519 = vmatpush1.bf16.msra.mxu0 %v458
        %520 = vmatprep.subr.bf16.mxu0 %v463
        %521 = vmatpush1.bf16.msra.mxu0 %v462
        %522 = vmatprep.subr.bf16.mxu0 %v467
        %523 = vmatpush1.bf16.msra.mxu0 %v466
        %524 = vmatprep.subr.bf16.mxu0 %v471
        %525 = vmatpush1.bf16.msra.mxu0 %v470
        %526 = vmatprep.subr.bf16.mxu0 %v475
        %527 = vmatpush1.bf16.msra.mxu0 %v474
        %528 = vmatprep.subr.bf16.mxu0 %v479
        %529 = vmatpush1.bf16.msra.mxu0 %v478
        %530 = vmatprep.subr.bf16.mxu0 0
        %531 = vmatpush1.bf16.msra.mxu0 0
        %532 = vmatprep.subr.bf16.mxu0 0
        %533 = vmatpush1.bf16.msra.mxu0 0
        %534 = vmatprep.subr.bf16.mxu0 0
        %535 = vmatpush1.bf16.msra.mxu0 0
        %536 = vmatprep.subr.bf16.mxu0 0
        %537 = vmatpush1.bf16.msra.mxu0 0
        %538 = vmatprep.subr.bf16.mxu0 0
        %539 = vmatpush1.bf16.msra.mxu0 0
        %540 = vmatprep.subr.bf16.mxu0 0
        %541 = vmatpush1.bf16.msra.mxu0 0
        %542 = vmatprep.subr.bf16.mxu0 0
        %543 = vmatpush1.bf16.msra.mxu0 0
        %544 = vmatprep.subr.bf16.mxu0 0
        %545 = vmatpush1.bf16.msra.mxu0 0
        %546 = vmatprep.mubr.bf16.mxu0 0
        %547 = vmatmul.mubr.bf16.gmra.mrb[0].mxu0 %v290
        %v548 = vpop.f32.mrb[0].mxu0
        %v549 = vadd.f32 %v337, %v548
        %v550 = vpop.f32.mrb[0].mxu0
        %v551 = vadd.f32 %v341, %v550
        %v552 = vpop.f32.mrb[0].mxu0
        %v553 = vadd.f32 %v337, %v552
        %v554 = vpop.f32.mrb[0].mxu0
        %v555 = vadd.f32 %v341, %v554
        %556 = vdwg.mxu0
        %557 = vmatprep.subr.bf16.mxu0 %v453
        %558 = vmatpush1.bf16.msra.mxu0 %v452
        %559 = vmatprep.subr.bf16.mxu0 %v457
        %560 = vmatpush1.bf16.msra.mxu0 %v456
        %561 = vmatprep.subr.bf16.mxu0 %v461
        %562 = vmatpush1.bf16.msra.mxu0 %v460
        %563 = vmatprep.subr.bf16.mxu0 %v465
        %564 = vmatpush1.bf16.msra.mxu0 %v464
        %565 = vmatprep.subr.bf16.mxu0 %v469
        %566 = vmatpush1.bf16.msra.mxu0 %v468
        %567 = vmatprep.subr.bf16.mxu0 %v473
        %568 = vmatpush1.bf16.msra.mxu0 %v472
        %569 = vmatprep.subr.bf16.mxu0 %v477
        %570 = vmatpush1.bf16.msra.mxu0 %v476
        %571 = vmatprep.subr.bf16.mxu0 %v481
        %572 = vmatpush1.bf16.msra.mxu0 %v480
        %573 = vmatprep.subr.bf16.mxu0 0
        %574 = vmatpush1.bf16.msra.mxu0 0
        %575 = vmatprep.subr.bf16.mxu0 0
        %576 = vmatpush1.bf16.msra.mxu0 0
        %577 = vmatprep.subr.bf16.mxu0 0
        %578 = vmatpush1.bf16.msra.mxu0 0
        %579 = vmatprep.subr.bf16.mxu0 0
        %580 = vmatpush1.bf16.msra.mxu0 0
        %581 = vmatprep.subr.bf16.mxu0 0
        %582 = vmatpush1.bf16.msra.mxu0 0
        %583 = vmatprep.subr.bf16.mxu0 0
        %584 = vmatpush1.bf16.msra.mxu0 0
        %585 = vmatprep.subr.bf16.mxu0 0
        %586 = vmatpush1.bf16.msra.mxu0 0
        %587 = vmatprep.subr.bf16.mxu0 0
        %588 = vmatpush1.bf16.msra.mxu0 0
        %589 = vmatprep.mubr.bf16.mxu0 0
        %590 = vmatmul.mubr.bf16.gmra.mrb[0].mxu0 %v290
        %v591 = vpop.f32.mrb[0].mxu0
        %v592 = vadd.f32 %v345, %v591
        %v593 = vpop.f32.mrb[0].mxu0
        %v594 = vadd.f32 %v349, %v593
        %v595 = vpop.f32.mrb[0].mxu0
        %v596 = vadd.f32 %v345, %v595
        %v597 = vpop.f32.mrb[0].mxu0
        %v598 = vadd.f32 %v349, %v597
        %599 = vdwg.mxu0
        %v600 = vmax.f32 %v549, 0.0
        %v601 = vmax.f32 %v551, 0.0
        %v602 = vmax.f32 %v592, 0.0
        %v603 = vmax.f32 %v594, 0.0
        %v604 = vmax.f32 %v553, 0.0
        %v605 = vmax.f32 %v555, 0.0
        %v606 = vmax.f32 %v596, 0.0
        %v607 = vmax.f32 %v598, 0.0
        %v608 = vld [vmem:[%s284] sm:$0xff]
        %v609 = vld [vmem:[%s284 + $0x8] sm:$0xff]
        %v610 = vpack.c.bf16 %v604, %v600
        %v611 = vpack.c.bf16 %v605, %v601
        %v612 = vpack.c.bf16 %v606, %v602
        %v613 = vpack.c.bf16 %v607, %v603
        %v614 = vld [vmem:[#allocation8] sm:$0xf]
        %v615 = vld [vmem:[#allocation8 + $0x4] sm:$0xf]
        %v616 = vld [vmem:[#allocation8 + $0x8] sm:$0xf]
        %v617 = vld [vmem:[#allocation8 + $0xc] sm:$0xf]
        %v618 = vld [vmem:[#allocation8 + $0x10] sm:$0xf]
        %v619 = vld [vmem:[#allocation8 + $0x14] sm:$0xf]
        %v620 = vld [vmem:[#allocation8 + $0x18] sm:$0xf]
        %v621 = vld [vmem:[#allocation8 + $0x1c] sm:$0xf]
        %v622 = vld [vmem:[#allocation8 + $0x20] sm:$0xf]
        %v623 = vld [vmem:[#allocation8 + $0x24] sm:$0xf]
        %v624 = vld [vmem:[#allocation8 + $0x28] sm:$0xf]
        %v625 = vld [vmem:[#allocation8 + $0x2c] sm:$0xf]
        %v626 = vld [vmem:[#allocation8 + $0x30] sm:$0xf]
        %v627 = vld [vmem:[#allocation8 + $0x34] sm:$0xf]
        %v628 = vld [vmem:[#allocation8 + $0x38] sm:$0xf]
        %v629 = vld [vmem:[#allocation8 + $0x3c] sm:$0xf]
        %v630 = vld [vmem:[#allocation8 + $0x40] sm:$0xf]
        %v631 = vld [vmem:[#allocation8 + $0x44] sm:$0xf]
        %v632 = vld [vmem:[#allocation8 + $0x48] sm:$0xf]
        %v633 = vld [vmem:[#allocation8 + $0x4c] sm:$0xf]
        %v634 = vld [vmem:[#allocation8 + $0x50] sm:$0xf]
        %v635 = vld [vmem:[#allocation8 + $0x54] sm:$0xf]
        %v636 = vld [vmem:[#allocation8 + $0x58] sm:$0xf]
        %v637 = vld [vmem:[#allocation8 + $0x5c] sm:$0xf]
        %v638 = vld [vmem:[#allocation8 + $0x60] sm:$0xf]
        %v639 = vld [vmem:[#allocation8 + $0x64] sm:$0xf]
        %v640 = vld [vmem:[#allocation8 + $0x68] sm:$0xf]
        %v641 = vld [vmem:[#allocation8 + $0x6c] sm:$0xf]
        %v642 = vld [vmem:[#allocation8 + $0x70] sm:$0xf]
        %v643 = vld [vmem:[#allocation8 + $0x74] sm:$0xf]
        %v644 = vld [vmem:[#allocation8 + $0x78] sm:$0xf]
        %v645 = vld [vmem:[#allocation8 + $0x7c] sm:$0xf]
        %v646 = vld [vmem:[#allocation8 + $0x80] sm:$0xf]
        %v647 = vld [vmem:[#allocation8 + $0x84] sm:$0xf]
        %v648 = vld [vmem:[#allocation8 + $0x88] sm:$0xf]
        %v649 = vld [vmem:[#allocation8 + $0x8c] sm:$0xf]
        %v650 = vld [vmem:[#allocation8 + $0x90] sm:$0xf]
        %v651 = vld [vmem:[#allocation8 + $0x94] sm:$0xf]
        %v652 = vld [vmem:[#allocation8 + $0x98] sm:$0xf]
        %v653 = vld [vmem:[#allocation8 + $0x9c] sm:$0xf]
        %v654 = vld [vmem:[#allocation8 + $0xa0] sm:$0xf]
        %v655 = vld [vmem:[#allocation8 + $0xa4] sm:$0xf]
        %v656 = vld [vmem:[#allocation8 + $0xa8] sm:$0xf]
        %v657 = vld [vmem:[#allocation8 + $0xac] sm:$0xf]
        %v658 = vld [vmem:[#allocation8 + $0xb0] sm:$0xf]
        %v659 = vld [vmem:[#allocation8 + $0xb4] sm:$0xf]
        %v660 = vld [vmem:[#allocation8 + $0xb8] sm:$0xf]
        %v661 = vld [vmem:[#allocation8 + $0xbc] sm:$0xf]
        %v662 = vld [vmem:[#allocation8 + $0xc0] sm:$0xf]
        %v663 = vld [vmem:[#allocation8 + $0xc4] sm:$0xf]
        %v664 = vld [vmem:[#allocation8 + $0xc8] sm:$0xf]
        %v665 = vld [vmem:[#allocation8 + $0xcc] sm:$0xf]
        %v666 = vld [vmem:[#allocation8 + $0xd0] sm:$0xf]
        %v667 = vld [vmem:[#allocation8 + $0xd4] sm:$0xf]
        %v668 = vld [vmem:[#allocation8 + $0xd8] sm:$0xf]
        %v669 = vld [vmem:[#allocation8 + $0xdc] sm:$0xf]
        %v670 = vld [vmem:[#allocation8 + $0xe0] sm:$0xf]
        %v671 = vld [vmem:[#allocation8 + $0xe4] sm:$0xf]
        %v672 = vld [vmem:[#allocation8 + $0xe8] sm:$0xf]
        %v673 = vld [vmem:[#allocation8 + $0xec] sm:$0xf]
        %v674 = vld [vmem:[#allocation8 + $0xf0] sm:$0xf]
        %v675 = vld [vmem:[#allocation8 + $0xf4] sm:$0xf]
        %v676 = vld [vmem:[#allocation8 + $0xf8] sm:$0xf]
        %v677 = vld [vmem:[#allocation8 + $0xfc] sm:$0xf]
        %v742 = vunpack.c.l.b16 %v614
        %v743 = vunpack.c.l.b16 %v615
        %v744 = vunpack.c.l.b16 %v616
        %v745 = vunpack.c.l.b16 %v617
        %v746 = vunpack.c.l.b16 %v618
        %v747 = vunpack.c.l.b16 %v619
        %v748 = vunpack.c.l.b16 %v620
        %v749 = vunpack.c.l.b16 %v621
        %v750 = vunpack.c.l.b16 %v622
        %v751 = vunpack.c.l.b16 %v623
        %v752 = vunpack.c.l.b16 %v624
        %v753 = vunpack.c.l.b16 %v625
        %v754 = vunpack.c.l.b16 %v626
        %v755 = vunpack.c.l.b16 %v627
        %v756 = vunpack.c.l.b16 %v628
        %v757 = vunpack.c.l.b16 %v629
        %v758 = vunpack.c.l.b16 %v630
        %v759 = vunpack.c.l.b16 %v631
        %v760 = vunpack.c.l.b16 %v632
        %v761 = vunpack.c.l.b16 %v633
        %v762 = vunpack.c.l.b16 %v634
        %v763 = vunpack.c.l.b16 %v635
        %v764 = vunpack.c.l.b16 %v636
        %v765 = vunpack.c.l.b16 %v637
        %v766 = vunpack.c.l.b16 %v638
        %v767 = vunpack.c.l.b16 %v639
        %v768 = vunpack.c.l.b16 %v640
        %v769 = vunpack.c.l.b16 %v641
        %v770 = vunpack.c.l.b16 %v642
        %v771 = vunpack.c.l.b16 %v643
        %v772 = vunpack.c.l.b16 %v644
        %v773 = vunpack.c.l.b16 %v645
        %v774 = vunpack.c.l.b16 %v646
        %v775 = vunpack.c.l.b16 %v647
        %v776 = vunpack.c.l.b16 %v648
        %v777 = vunpack.c.l.b16 %v649
        %v778 = vunpack.c.l.b16 %v650
        %v779 = vunpack.c.l.b16 %v651
        %v780 = vunpack.c.l.b16 %v652
        %v781 = vunpack.c.l.b16 %v653
        %v782 = vunpack.c.l.b16 %v654
        %v783 = vunpack.c.l.b16 %v655
        %v784 = vunpack.c.l.b16 %v656
        %v785 = vunpack.c.l.b16 %v657
        %v786 = vunpack.c.l.b16 %v658
        %v787 = vunpack.c.l.b16 %v659
        %v788 = vunpack.c.l.b16 %v660
        %v789 = vunpack.c.l.b16 %v661
        %v790 = vunpack.c.l.b16 %v662
        %v791 = vunpack.c.l.b16 %v663
        %v792 = vunpack.c.l.b16 %v664
        %v793 = vunpack.c.l.b16 %v665
        %v794 = vunpack.c.l.b16 %v666
        %v795 = vunpack.c.l.b16 %v667
        %v796 = vunpack.c.l.b16 %v668
        %v797 = vunpack.c.l.b16 %v669
        %v798 = vunpack.c.l.b16 %v670
        %v799 = vunpack.c.l.b16 %v671
        %v800 = vunpack.c.l.b16 %v672
        %v801 = vunpack.c.l.b16 %v673
        %v802 = vunpack.c.l.b16 %v674
        %v803 = vunpack.c.l.b16 %v675
        %v804 = vunpack.c.l.b16 %v676
        %v805 = vunpack.c.l.b16 %v677
        %v806 = vpack.c.b16 %v743, %v742
        %v807 = vpack.c.b16 %v745, %v744
        %v808 = vpack.c.b16 %v747, %v746
        %v809 = vpack.c.b16 %v749, %v748
        %v810 = vpack.c.b16 %v751, %v750
        %v811 = vpack.c.b16 %v753, %v752
        %v812 = vpack.c.b16 %v755, %v754
        %v813 = vpack.c.b16 %v757, %v756
        %v814 = vpack.c.b16 %v759, %v758
        %v815 = vpack.c.b16 %v761, %v760
        %v816 = vpack.c.b16 %v763, %v762
        %v817 = vpack.c.b16 %v765, %v764
        %v818 = vpack.c.b16 %v767, %v766
        %v819 = vpack.c.b16 %v769, %v768
        %v820 = vpack.c.b16 %v771, %v770
        %v821 = vpack.c.b16 %v773, %v772
        %v822 = vpack.c.b16 %v775, %v774
        %v823 = vpack.c.b16 %v777, %v776
        %v824 = vpack.c.b16 %v779, %v778
        %v825 = vpack.c.b16 %v781, %v780
        %v826 = vpack.c.b16 %v783, %v782
        %v827 = vpack.c.b16 %v785, %v784
        %v828 = vpack.c.b16 %v787, %v786
        %v829 = vpack.c.b16 %v789, %v788
        %v830 = vpack.c.b16 %v791, %v790
        %v831 = vpack.c.b16 %v793, %v792
        %v832 = vpack.c.b16 %v795, %v794
        %v833 = vpack.c.b16 %v797, %v796
        %v834 = vpack.c.b16 %v799, %v798
        %v835 = vpack.c.b16 %v801, %v800
        %v836 = vpack.c.b16 %v803, %v802
        %v837 = vpack.c.b16 %v805, %v804
        %870 = vmatprep.subr.bf16.mxu0 0
        %871 = vmatpush1.bf16.msra.mxu0 %v806
        %872 = vmatprep.subr.bf16.mxu0 0
        %873 = vmatpush1.bf16.msra.mxu0 %v807
        %874 = vmatprep.subr.bf16.mxu0 0
        %875 = vmatpush1.bf16.msra.mxu0 %v808
        %876 = vmatprep.subr.bf16.mxu0 0
        %877 = vmatpush1.bf16.msra.mxu0 %v809
        %878 = vmatprep.subr.bf16.mxu0 0
        %879 = vmatpush1.bf16.msra.mxu0 %v810
        %880 = vmatprep.subr.bf16.mxu0 0
        %881 = vmatpush1.bf16.msra.mxu0 %v811
        %882 = vmatprep.subr.bf16.mxu0 0
        %883 = vmatpush1.bf16.msra.mxu0 %v812
        %884 = vmatprep.subr.bf16.mxu0 0
        %885 = vmatpush1.bf16.msra.mxu0 %v813
        %886 = vmatprep.subr.bf16.mxu0 0
        %887 = vmatpush1.bf16.msra.mxu0 %v814
        %888 = vmatprep.subr.bf16.mxu0 0
        %889 = vmatpush1.bf16.msra.mxu0 %v815
        %890 = vmatprep.subr.bf16.mxu0 0
        %891 = vmatpush1.bf16.msra.mxu0 %v816
        %892 = vmatprep.subr.bf16.mxu0 0
        %893 = vmatpush1.bf16.msra.mxu0 %v817
        %894 = vmatprep.subr.bf16.mxu0 0
        %895 = vmatpush1.bf16.msra.mxu0 %v818
        %896 = vmatprep.subr.bf16.mxu0 0
        %897 = vmatpush1.bf16.msra.mxu0 %v819
        %898 = vmatprep.subr.bf16.mxu0 0
        %899 = vmatpush1.bf16.msra.mxu0 %v820
        %900 = vmatprep.subr.bf16.mxu0 0
        %901 = vmatpush1.bf16.msra.mxu0 %v821
        %902 = vmatprep.mubr.bf16.mxu0 %v611
        %903 = vmatmul.mubr.bf16.gmra.mrb[0].mxu0 %v610
        %v904 = vpop.f32.mrb[0].mxu0
        %v905 = vadd.f32 0.0, %v904
        %v906 = vpop.f32.mrb[0].mxu0
        %v907 = vpop.f32.mrb[0].mxu0
        %v908 = vadd.f32 0.0, %v907
        %v909 = vpop.f32.mrb[0].mxu0
        %910 = vdwg.mxu0
        %911 = vmatprep.subr.bf16.mxu0 0
        %912 = vmatpush1.bf16.msra.mxu0 %v822
        %913 = vmatprep.subr.bf16.mxu0 0
        %914 = vmatpush1.bf16.msra.mxu0 %v823
        %915 = vmatprep.subr.bf16.mxu0 0
        %916 = vmatpush1.bf16.msra.mxu0 %v824
        %917 = vmatprep.subr.bf16.mxu0 0
        %918 = vmatpush1.bf16.msra.mxu0 %v825
        %919 = vmatprep.subr.bf16.mxu0 0
        %920 = vmatpush1.bf16.msra.mxu0 %v826
        %921 = vmatprep.subr.bf16.mxu0 0
        %922 = vmatpush1.bf16.msra.mxu0 %v827
        %923 = vmatprep.subr.bf16.mxu0 0
        %924 = vmatpush1.bf16.msra.mxu0 %v828
        %925 = vmatprep.subr.bf16.mxu0 0
        %926 = vmatpush1.bf16.msra.mxu0 %v829
        %927 = vmatprep.subr.bf16.mxu0 0
        %928 = vmatpush1.bf16.msra.mxu0 %v830
        %929 = vmatprep.subr.bf16.mxu0 0
        %930 = vmatpush1.bf16.msra.mxu0 %v831
        %931 = vmatprep.subr.bf16.mxu0 0
        %932 = vmatpush1.bf16.msra.mxu0 %v832
        %933 = vmatprep.subr.bf16.mxu0 0
        %934 = vmatpush1.bf16.msra.mxu0 %v833
        %935 = vmatprep.subr.bf16.mxu0 0
        %936 = vmatpush1.bf16.msra.mxu0 %v834
        %937 = vmatprep.subr.bf16.mxu0 0
        %938 = vmatpush1.bf16.msra.mxu0 %v835
        %939 = vmatprep.subr.bf16.mxu0 0
        %940 = vmatpush1.bf16.msra.mxu0 %v836
        %941 = vmatprep.subr.bf16.mxu0 0
        %942 = vmatpush1.bf16.msra.mxu0 %v837
        %943 = vmatprep.mubr.bf16.mxu0 %v613
        %944 = vmatmul.mubr.bf16.gmra.mrb[0].mxu0 %v612
        %v945 = vpop.f32.mrb[0].mxu0
        %v946 = vadd.f32 %v905, %v945
        %v947 = vpop.f32.mrb[0].mxu0
        %v948 = vpop.f32.mrb[0].mxu0
        %v949 = vadd.f32 %v908, %v948
        %v950 = vpop.f32.mrb[0].mxu0
        %951 = vdwg.mxu0
        %v952 = vadd.f32 %v608, %v946
        %v953 = vadd.f32 %v609, %v949
        %954 = vst [vmem:[%s284] sm:$0xff] %v952
        %955 = vst [vmem:[%s284 + $0x8] sm:$0xff] %v953
        %v956 = vld [vmem:[#allocation5 + $0x10] sm:$0xff]
        %v957 = vld [vmem:[#allocation5 + $0x18] sm:$0xff]
        %v958 = vld [vmem:[#allocation5 + $0x30] sm:$0xff]
        %v959 = vld [vmem:[#allocation5 + $0x38] sm:$0xff]
        %v960 = vld [vmem:[#allocation5 + $0x50] sm:$0xff]
        %v961 = vld [vmem:[#allocation5 + $0x58] sm:$0xff]
        %v962 = vld [vmem:[#allocation5 + $0x70] sm:$0xff]
        %v963 = vld [vmem:[#allocation5 + $0x78] sm:$0xff]
        %v964 = vld [vmem:[#allocation5 + $0x90] sm:$0xff]
        %v965 = vld [vmem:[#allocation5 + $0x98] sm:$0xff]
        %v966 = vld [vmem:[#allocation5 + $0xb0] sm:$0xff]
        %v967 = vld [vmem:[#allocation5 + $0xb8] sm:$0xff]
        %v968 = vld [vmem:[#allocation5 + $0xd0] sm:$0xff]
        %v969 = vld [vmem:[#allocation5 + $0xd8] sm:$0xff]
        %v970 = vld [vmem:[#allocation5 + $0xf0] sm:$0xff]
        %v971 = vld [vmem:[#allocation5 + $0xf8] sm:$0xff]
        %v972 = vld [vmem:[#allocation5 + $0x110] sm:$0xff]
        %v973 = vld [vmem:[#allocation5 + $0x118] sm:$0xff]
        %v974 = vld [vmem:[#allocation5 + $0x130] sm:$0xff]
        %v975 = vld [vmem:[#allocation5 + $0x138] sm:$0xff]
        %v976 = vld [vmem:[#allocation5 + $0x150] sm:$0xff]
        %v977 = vld [vmem:[#allocation5 + $0x158] sm:$0xff]
        %v978 = vld [vmem:[#allocation5 + $0x170] sm:$0xff]
        %v979 = vld [vmem:[#allocation5 + $0x178] sm:$0xff]
        %v980 = vld [vmem:[#allocation5 + $0x190] sm:$0xff]
        %v981 = vld [vmem:[#allocation5 + $0x198] sm:$0xff]
        %v982 = vld [vmem:[#allocation5 + $0x1b0] sm:$0xff]
        %v983 = vld [vmem:[#allocation5 + $0x1b8] sm:$0xff]
        %v984 = vld [vmem:[#allocation5 + $0x1d0] sm:$0xff]
        %v985 = vld [vmem:[#allocation5 + $0x1d8] sm:$0xff]
        %v986 = vld [vmem:[#allocation5 + $0x1f0] sm:$0xff]
        %v987 = vld [vmem:[#allocation5 + $0x1f8] sm:$0xff]
        %v988 = vld [vmem:[#allocation7 + $0x4] sm:$0xf]
        %v990 = vlaneseq
        %v991 = vshrl.u32 %v990, 7
        %v992 = vsub.s32 0, %v991
        %v993 = vrot.slane %v988, %v992
        %v994 = vlaneseq
        %v995 = vshrl.u32 %v994, 7
        %v996 = vsub.s32 1, %v995
        %v997 = vrot.slane %v988, %v996
        %v998 = vlaneseq
        %v999 = vshrl.u32 %v998, 7
        %v1000 = vsub.s32 2, %v999
        %v1001 = vrot.slane %v988, %v1000
        %v1002 = vlaneseq
        %v1003 = vshrl.u32 %v1002, 7
        %v1004 = vsub.s32 3, %v1003
        %v1005 = vrot.slane %v988, %v1004
        %v1042 = vunpack.c.l.b16 %v956
        %v1043 = vunpack.c.h.b16 %v956
        %v1044 = vunpack.c.l.b16 %v957
        %v1045 = vunpack.c.h.b16 %v957
        %v1046 = vunpack.c.l.b16 %v958
        %v1047 = vunpack.c.h.b16 %v958
        %v1048 = vunpack.c.l.b16 %v959
        %v1049 = vunpack.c.h.b16 %v959
        %v1050 = vunpack.c.l.b16 %v960
        %v1051 = vunpack.c.h.b16 %v960
        %v1052 = vunpack.c.l.b16 %v961
        %v1053 = vunpack.c.h.b16 %v961
        %v1054 = vunpack.c.l.b16 %v962
        %v1055 = vunpack.c.h.b16 %v962
        %v1056 = vunpack.c.l.b16 %v963
        %v1057 = vunpack.c.h.b16 %v963
        %v1058 = vunpack.c.l.b16 %v964
        %v1059 = vunpack.c.h.b16 %v964
        %v1060 = vunpack.c.l.b16 %v965
        %v1061 = vunpack.c.h.b16 %v965
        %v1062 = vunpack.c.l.b16 %v966
        %v1063 = vunpack.c.h.b16 %v966
        %v1064 = vunpack.c.l.b16 %v967
        %v1065 = vunpack.c.h.b16 %v967
        %v1066 = vunpack.c.l.b16 %v968
        %v1067 = vunpack.c.h.b16 %v968
        %v1068 = vunpack.c.l.b16 %v969
        %v1069 = vunpack.c.h.b16 %v969
        %v1070 = vunpack.c.l.b16 %v970
        %v1071 = vunpack.c.h.b16 %v970
        %v1072 = vunpack.c.l.b16 %v971
        %v1073 = vunpack.c.h.b16 %v971
        %v1074 = vunpack.c.l.b16 %v972
        %v1075 = vunpack.c.h.b16 %v972
        %v1076 = vunpack.c.l.b16 %v973
        %v1077 = vunpack.c.h.b16 %v973
        %v1078 = vunpack.c.l.b16 %v974
        %v1079 = vunpack.c.h.b16 %v974
        %v1080 = vunpack.c.l.b16 %v975
        %v1081 = vunpack.c.h.b16 %v975
        %v1082 = vunpack.c.l.b16 %v976
        %v1083 = vunpack.c.h.b16 %v976
        %v1084 = vunpack.c.l.b16 %v977
        %v1085 = vunpack.c.h.b16 %v977
        %v1086 = vunpack.c.l.b16 %v978
        %v1087 = vunpack.c.h.b16 %v978
        %v1088 = vunpack.c.l.b16 %v979
        %v1089 = vunpack.c.h.b16 %v979
        %v1090 = vunpack.c.l.b16 %v980
        %v1091 = vunpack.c.h.b16 %v980
        %v1092 = vunpack.c.l.b16 %v981
        %v1093 = vunpack.c.h.b16 %v981
        %v1094 = vunpack.c.l.b16 %v982
        %v1095 = vunpack.c.h.b16 %v982
        %v1096 = vunpack.c.l.b16 %v983
        %v1097 = vunpack.c.h.b16 %v983
        %v1098 = vunpack.c.l.b16 %v984
        %v1099 = vunpack.c.h.b16 %v984
        %v1100 = vunpack.c.l.b16 %v985
        %v1101 = vunpack.c.h.b16 %v985
        %v1102 = vunpack.c.l.b16 %v986
        %v1103 = vunpack.c.h.b16 %v986
        %v1104 = vunpack.c.l.b16 %v987
        %v1105 = vunpack.c.h.b16 %v987
        %v1106 = vpack.c.b16 %v1046, %v1042
        %v1107 = vpack.c.b16 %v1047, %v1043
        %v1108 = vpack.c.b16 %v1048, %v1044
        %v1109 = vpack.c.b16 %v1049, %v1045
        %v1110 = vpack.c.b16 %v1054, %v1050
        %v1111 = vpack.c.b16 %v1055, %v1051
        %v1112 = vpack.c.b16 %v1056, %v1052
        %v1113 = vpack.c.b16 %v1057, %v1053
        %v1114 = vpack.c.b16 %v1062, %v1058
        %v1115 = vpack.c.b16 %v1063, %v1059
        %v1116 = vpack.c.b16 %v1064, %v1060
        %v1117 = vpack.c.b16 %v1065, %v1061
        %v1118 = vpack.c.b16 %v1070, %v1066
        %v1119 = vpack.c.b16 %v1071, %v1067
        %v1120 = vpack.c.b16 %v1072, %v1068
        %v1121 = vpack.c.b16 %v1073, %v1069
        %v1122 = vpack.c.b16 %v1078, %v1074
        %v1123 = vpack.c.b16 %v1079, %v1075
        %v1124 = vpack.c.b16 %v1080, %v1076
        %v1125 = vpack.c.b16 %v1081, %v1077
        %v1126 = vpack.c.b16 %v1086, %v1082
        %v1127 = vpack.c.b16 %v1087, %v1083
        %v1128 = vpack.c.b16 %v1088, %v1084
        %v1129 = vpack.c.b16 %v1089, %v1085
        %v1130 = vpack.c.b16 %v1094, %v1090
        %v1131 = vpack.c.b16 %v1095, %v1091
        %v1132 = vpack.c.b16 %v1096, %v1092
        %v1133 = vpack.c.b16 %v1097, %v1093
        %v1134 = vpack.c.b16 %v1102, %v1098
        %v1135 = vpack.c.b16 %v1103, %v1099
        %v1136 = vpack.c.b16 %v1104, %v1100
        %v1137 = vpack.c.b16 %v1105, %v1101
        %1170 = vmatprep.subr.bf16.mxu0 %v1107
        %1171 = vmatpush1.bf16.msra.mxu0 %v1106
        %1172 = vmatprep.subr.bf16.mxu0 %v1111
        %1173 = vmatpush1.bf16.msra.mxu0 %v1110
        %1174 = vmatprep.subr.bf16.mxu0 %v1115
        %1175 = vmatpush1.bf16.msra.mxu0 %v1114
        %1176 = vmatprep.subr.bf16.mxu0 %v1119
        %1177 = vmatpush1.bf16.msra.mxu0 %v1118
        %1178 = vmatprep.subr.bf16.mxu0 %v1123
        %1179 = vmatpush1.bf16.msra.mxu0 %v1122
        %1180 = vmatprep.subr.bf16.mxu0 %v1127
        %1181 = vmatpush1.bf16.msra.mxu0 %v1126
        %1182 = vmatprep.subr.bf16.mxu0 %v1131
        %1183 = vmatpush1.bf16.msra.mxu0 %v1130
        %1184 = vmatprep.subr.bf16.mxu0 %v1135
        %1185 = vmatpush1.bf16.msra.mxu0 %v1134
        %1186 = vmatprep.subr.bf16.mxu0 0
        %1187 = vmatpush1.bf16.msra.mxu0 0
        %1188 = vmatprep.subr.bf16.mxu0 0
        %1189 = vmatpush1.bf16.msra.mxu0 0
        %1190 = vmatprep.subr.bf16.mxu0 0
        %1191 = vmatpush1.bf16.msra.mxu0 0
        %1192 = vmatprep.subr.bf16.mxu0 0
        %1193 = vmatpush1.bf16.msra.mxu0 0
        %1194 = vmatprep.subr.bf16.mxu0 0
        %1195 = vmatpush1.bf16.msra.mxu0 0
        %1196 = vmatprep.subr.bf16.mxu0 0
        %1197 = vmatpush1.bf16.msra.mxu0 0
        %1198 = vmatprep.subr.bf16.mxu0 0
        %1199 = vmatpush1.bf16.msra.mxu0 0
        %1200 = vmatprep.subr.bf16.mxu0 0
        %1201 = vmatpush1.bf16.msra.mxu0 0
        %1202 = vmatprep.mubr.bf16.mxu0 0
        %1203 = vmatmul.mubr.bf16.gmra.mrb[0].mxu0 %v290
        %v1204 = vpop.f32.mrb[0].mxu0
        %v1205 = vadd.f32 %v993, %v1204
        %v1206 = vpop.f32.mrb[0].mxu0
        %v1207 = vadd.f32 %v997, %v1206
        %v1208 = vpop.f32.mrb[0].mxu0
        %v1209 = vadd.f32 %v993, %v1208
        %v1210 = vpop.f32.mrb[0].mxu0
        %v1211 = vadd.f32 %v997, %v1210
        %1212 = vdwg.mxu0
        %1213 = vmatprep.subr.bf16.mxu0 %v1109
        %1214 = vmatpush1.bf16.msra.mxu0 %v1108
        %1215 = vmatprep.subr.bf16.mxu0 %v1113
        %1216 = vmatpush1.bf16.msra.mxu0 %v1112
        %1217 = vmatprep.subr.bf16.mxu0 %v1117
        %1218 = vmatpush1.bf16.msra.mxu0 %v1116
        %1219 = vmatprep.subr.bf16.mxu0 %v1121
        %1220 = vmatpush1.bf16.msra.mxu0 %v1120
        %1221 = vmatprep.subr.bf16.mxu0 %v1125
        %1222 = vmatpush1.bf16.msra.mxu0 %v1124
        %1223 = vmatprep.subr.bf16.mxu0 %v1129
        %1224 = vmatpush1.bf16.msra.mxu0 %v1128
        %1225 = vmatprep.subr.bf16.mxu0 %v1133
        %1226 = vmatpush1.bf16.msra.mxu0 %v1132
        %1227 = vmatprep.subr.bf16.mxu0 %v1137
        %1228 = vmatpush1.bf16.msra.mxu0 %v1136
        %1229 = vmatprep.subr.bf16.mxu0 0
        %1230 = vmatpush1.bf16.msra.mxu0 0
        %1231 = vmatprep.subr.bf16.mxu0 0
        %1232 = vmatpush1.bf16.msra.mxu0 0
        %1233 = vmatprep.subr.bf16.mxu0 0
        %1234 = vmatpush1.bf16.msra.mxu0 0
        %1235 = vmatprep.subr.bf16.mxu0 0
        %1236 = vmatpush1.bf16.msra.mxu0 0
        %1237 = vmatprep.subr.bf16.mxu0 0
        %1238 = vmatpush1.bf16.msra.mxu0 0
        %1239 = vmatprep.subr.bf16.mxu0 0
        %1240 = vmatpush1.bf16.msra.mxu0 0
        %1241 = vmatprep.subr.bf16.mxu0 0
        %1242 = vmatpush1.bf16.msra.mxu0 0
        %1243 = vmatprep.subr.bf16.mxu0 0
        %1244 = vmatpush1.bf16.msra.mxu0 0
        %1245 = vmatprep.mubr.bf16.mxu0 0
        %1246 = vmatmul.mubr.bf16.gmra.mrb[0].mxu0 %v290
        %v1247 = vpop.f32.mrb[0].mxu0
        %v1248 = vadd.f32 %v1001, %v1247
        %v1249 = vpop.f32.mrb[0].mxu0
        %v1250 = vadd.f32 %v1005, %v1249
        %v1251 = vpop.f32.mrb[0].mxu0
        %v1252 = vadd.f32 %v1001, %v1251
        %v1253 = vpop.f32.mrb[0].mxu0
        %v1254 = vadd.f32 %v1005, %v1253
        %1255 = vdwg.mxu0
        %v1256 = vmax.f32 %v1205, 0.0
        %v1257 = vmax.f32 %v1207, 0.0
        %v1258 = vmax.f32 %v1248, 0.0
        %v1259 = vmax.f32 %v1250, 0.0
        %v1260 = vmax.f32 %v1209, 0.0
        %v1261 = vmax.f32 %v1211, 0.0
        %v1262 = vmax.f32 %v1252, 0.0
        %v1263 = vmax.f32 %v1254, 0.0
        %v1264 = vld [vmem:[%s284] sm:$0xff]
        %v1265 = vld [vmem:[%s284 + $0x8] sm:$0xff]
        %v1266 = vpack.c.bf16 %v1260, %v1256
        %v1267 = vpack.c.bf16 %v1261, %v1257
        %v1268 = vpack.c.bf16 %v1262, %v1258
        %v1269 = vpack.c.bf16 %v1263, %v1259
        %v1270 = vld [vmem:[#allocation8 + $0x100] sm:$0xf]
        %v1271 = vld [vmem:[#allocation8 + $0x104] sm:$0xf]
        %v1272 = vld [vmem:[#allocation8 + $0x108] sm:$0xf]
        %v1273 = vld [vmem:[#allocation8 + $0x10c] sm:$0xf]
        %v1274 = vld [vmem:[#allocation8 + $0x110] sm:$0xf]
        %v1275 = vld [vmem:[#allocation8 + $0x114] sm:$0xf]
        %v1276 = vld [vmem:[#allocation8 + $0x118] sm:$0xf]
        %v1277 = vld [vmem:[#allocation8 + $0x11c] sm:$0xf]
        %v1278 = vld [vmem:[#allocation8 + $0x120] sm:$0xf]
        %v1279 = vld [vmem:[#allocation8 + $0x124] sm:$0xf]
        %v1280 = vld [vmem:[#allocation8 + $0x128] sm:$0xf]
        %v1281 = vld [vmem:[#allocation8 + $0x12c] sm:$0xf]
        %v1282 = vld [vmem:[#allocation8 + $0x130] sm:$0xf]
        %v1283 = vld [vmem:[#allocation8 + $0x134] sm:$0xf]
        %v1284 = vld [vmem:[#allocation8 + $0x138] sm:$0xf]
        %v1285 = vld [vmem:[#allocation8 + $0x13c] sm:$0xf]
        %v1286 = vld [vmem:[#allocation8 + $0x140] sm:$0xf]
        %v1287 = vld [vmem:[#allocation8 + $0x144] sm:$0xf]
        %v1288 = vld [vmem:[#allocation8 + $0x148] sm:$0xf]
        %v1289 = vld [vmem:[#allocation8 + $0x14c] sm:$0xf]
        %v1290 = vld [vmem:[#allocation8 + $0x150] sm:$0xf]
        %v1291 = vld [vmem:[#allocation8 + $0x154] sm:$0xf]
        %v1292 = vld [vmem:[#allocation8 + $0x158] sm:$0xf]
        %v1293 = vld [vmem:[#allocation8 + $0x15c] sm:$0xf]
        %v1294 = vld [vmem:[#allocation8 + $0x160] sm:$0xf]
        %v1295 = vld [vmem:[#allocation8 + $0x164] sm:$0xf]
        %v1296 = vld [vmem:[#allocation8 + $0x168] sm:$0xf]
        %v1297 = vld [vmem:[#allocation8 + $0x16c] sm:$0xf]
        %v1298 = vld [vmem:[#allocation8 + $0x170] sm:$0xf]
        %v1299 = vld [vmem:[#allocation8 + $0x174] sm:$0xf]
        %v1300 = vld [vmem:[#allocation8 + $0x178] sm:$0xf]
        %v1301 = vld [vmem:[#allocation8 + $0x17c] sm:$0xf]
        %v1302 = vld [vmem:[#allocation8 + $0x180] sm:$0xf]
        %v1303 = vld [vmem:[#allocation8 + $0x184] sm:$0xf]
        %v1304 = vld [vmem:[#allocation8 + $0x188] sm:$0xf]
        %v1305 = vld [vmem:[#allocation8 + $0x18c] sm:$0xf]
        %v1306 = vld [vmem:[#allocation8 + $0x190] sm:$0xf]
        %v1307 = vld [vmem:[#allocation8 + $0x194] sm:$0xf]
        %v1308 = vld [vmem:[#allocation8 + $0x198] sm:$0xf]
        %v1309 = vld [vmem:[#allocation8 + $0x19c] sm:$0xf]
        %v1310 = vld [vmem:[#allocation8 + $0x1a0] sm:$0xf]
        %v1311 = vld [vmem:[#allocation8 + $0x1a4] sm:$0xf]
        %v1312 = vld [vmem:[#allocation8 + $0x1a8] sm:$0xf]
        %v1313 = vld [vmem:[#allocation8 + $0x1ac] sm:$0xf]
        %v1314 = vld [vmem:[#allocation8 + $0x1b0] sm:$0xf]
        %v1315 = vld [vmem:[#allocation8 + $0x1b4] sm:$0xf]
        %v1316 = vld [vmem:[#allocation8 + $0x1b8] sm:$0xf]
        %v1317 = vld [vmem:[#allocation8 + $0x1bc] sm:$0xf]
        %v1318 = vld [vmem:[#allocation8 + $0x1c0] sm:$0xf]
        %v1319 = vld [vmem:[#allocation8 + $0x1c4] sm:$0xf]
        %v1320 = vld [vmem:[#allocation8 + $0x1c8] sm:$0xf]
        %v1321 = vld [vmem:[#allocation8 + $0x1cc] sm:$0xf]
        %v1322 = vld [vmem:[#allocation8 + $0x1d0] sm:$0xf]
        %v1323 = vld [vmem:[#allocation8 + $0x1d4] sm:$0xf]
        %v1324 = vld [vmem:[#allocation8 + $0x1d8] sm:$0xf]
        %v1325 = vld [vmem:[#allocation8 + $0x1dc] sm:$0xf]
        %v1326 = vld [vmem:[#allocation8 + $0x1e0] sm:$0xf]
        %v1327 = vld [vmem:[#allocation8 + $0x1e4] sm:$0xf]
        %v1328 = vld [vmem:[#allocation8 + $0x1e8] sm:$0xf]
        %v1329 = vld [vmem:[#allocation8 + $0x1ec] sm:$0xf]
        %v1330 = vld [vmem:[#allocation8 + $0x1f0] sm:$0xf]
        %v1331 = vld [vmem:[#allocation8 + $0x1f4] sm:$0xf]
        %v1332 = vld [vmem:[#allocation8 + $0x1f8] sm:$0xf]
        %v1333 = vld [vmem:[#allocation8 + $0x1fc] sm:$0xf]
        %v1398 = vunpack.c.l.b16 %v1270
        %v1399 = vunpack.c.l.b16 %v1271
        %v1400 = vunpack.c.l.b16 %v1272
        %v1401 = vunpack.c.l.b16 %v1273
        %v1402 = vunpack.c.l.b16 %v1274
        %v1403 = vunpack.c.l.b16 %v1275
        %v1404 = vunpack.c.l.b16 %v1276
        %v1405 = vunpack.c.l.b16 %v1277
        %v1406 = vunpack.c.l.b16 %v1278
        %v1407 = vunpack.c.l.b16 %v1279
        %v1408 = vunpack.c.l.b16 %v1280
        %v1409 = vunpack.c.l.b16 %v1281
        %v1410 = vunpack.c.l.b16 %v1282
        %v1411 = vunpack.c.l.b16 %v1283
        %v1412 = vunpack.c.l.b16 %v1284
        %v1413 = vunpack.c.l.b16 %v1285
        %v1414 = vunpack.c.l.b16 %v1286
        %v1415 = vunpack.c.l.b16 %v1287
        %v1416 = vunpack.c.l.b16 %v1288
        %v1417 = vunpack.c.l.b16 %v1289
        %v1418 = vunpack.c.l.b16 %v1290
        %v1419 = vunpack.c.l.b16 %v1291
        %v1420 = vunpack.c.l.b16 %v1292
        %v1421 = vunpack.c.l.b16 %v1293
        %v1422 = vunpack.c.l.b16 %v1294
        %v1423 = vunpack.c.l.b16 %v1295
        %v1424 = vunpack.c.l.b16 %v1296
        %v1425 = vunpack.c.l.b16 %v1297
        %v1426 = vunpack.c.l.b16 %v1298
        %v1427 = vunpack.c.l.b16 %v1299
        %v1428 = vunpack.c.l.b16 %v1300
        %v1429 = vunpack.c.l.b16 %v1301
        %v1430 = vunpack.c.l.b16 %v1302
        %v1431 = vunpack.c.l.b16 %v1303
        %v1432 = vunpack.c.l.b16 %v1304
        %v1433 = vunpack.c.l.b16 %v1305
        %v1434 = vunpack.c.l.b16 %v1306
        %v1435 = vunpack.c.l.b16 %v1307
        %v1436 = vunpack.c.l.b16 %v1308
        %v1437 = vunpack.c.l.b16 %v1309
        %v1438 = vunpack.c.l.b16 %v1310
        %v1439 = vunpack.c.l.b16 %v1311
        %v1440 = vunpack.c.l.b16 %v1312
        %v1441 = vunpack.c.l.b16 %v1313
        %v1442 = vunpack.c.l.b16 %v1314
        %v1443 = vunpack.c.l.b16 %v1315
        %v1444 = vunpack.c.l.b16 %v1316
        %v1445 = vunpack.c.l.b16 %v1317
        %v1446 = vunpack.c.l.b16 %v1318
        %v1447 = vunpack.c.l.b16 %v1319
        %v1448 = vunpack.c.l.b16 %v1320
        %v1449 = vunpack.c.l.b16 %v1321
        %v1450 = vunpack.c.l.b16 %v1322
        %v1451 = vunpack.c.l.b16 %v1323
        %v1452 = vunpack.c.l.b16 %v1324
        %v1453 = vunpack.c.l.b16 %v1325
        %v1454 = vunpack.c.l.b16 %v1326
        %v1455 = vunpack.c.l.b16 %v1327
        %v1456 = vunpack.c.l.b16 %v1328
        %v1457 = vunpack.c.l.b16 %v1329
        %v1458 = vunpack.c.l.b16 %v1330
        %v1459 = vunpack.c.l.b16 %v1331
        %v1460 = vunpack.c.l.b16 %v1332
        %v1461 = vunpack.c.l.b16 %v1333
        %v1462 = vpack.c.b16 %v1399, %v1398
        %v1463 = vpack.c.b16 %v1401, %v1400
        %v1464 = vpack.c.b16 %v1403, %v1402
        %v1465 = vpack.c.b16 %v1405, %v1404
        %v1466 = vpack.c.b16 %v1407, %v1406
        %v1467 = vpack.c.b16 %v1409, %v1408
        %v1468 = vpack.c.b16 %v1411, %v1410
        %v1469 = vpack.c.b16 %v1413, %v1412
        %v1470 = vpack.c.b16 %v1415, %v1414
        %v1471 = vpack.c.b16 %v1417, %v1416
        %v1472 = vpack.c.b16 %v1419, %v1418
        %v1473 = vpack.c.b16 %v1421, %v1420
        %v1474 = vpack.c.b16 %v1423, %v1422
        %v1475 = vpack.c.b16 %v1425, %v1424
        %v1476 = vpack.c.b16 %v1427, %v1426
        %v1477 = vpack.c.b16 %v1429, %v1428
        %v1478 = vpack.c.b16 %v1431, %v1430
        %v1479 = vpack.c.b16 %v1433, %v1432
        %v1480 = vpack.c.b16 %v1435, %v1434
        %v1481 = vpack.c.b16 %v1437, %v1436
        %v1482 = vpack.c.b16 %v1439, %v1438
        %v1483 = vpack.c.b16 %v1441, %v1440
        %v1484 = vpack.c.b16 %v1443, %v1442
        %v1485 = vpack.c.b16 %v1445, %v1444
        %v1486 = vpack.c.b16 %v1447, %v1446
        %v1487 = vpack.c.b16 %v1449, %v1448
        %v1488 = vpack.c.b16 %v1451, %v1450
        %v1489 = vpack.c.b16 %v1453, %v1452
        %v1490 = vpack.c.b16 %v1455, %v1454
        %v1491 = vpack.c.b16 %v1457, %v1456
        %v1492 = vpack.c.b16 %v1459, %v1458
        %v1493 = vpack.c.b16 %v1461, %v1460
        %1526 = vmatprep.subr.bf16.mxu0 0
        %1527 = vmatpush1.bf16.msra.mxu0 %v1462
        %1528 = vmatprep.subr.bf16.mxu0 0
        %1529 = vmatpush1.bf16.msra.mxu0 %v1463
        %1530 = vmatprep.subr.bf16.mxu0 0
        %1531 = vmatpush1.bf16.msra.mxu0 %v1464
        %1532 = vmatprep.subr.bf16.mxu0 0
        %1533 = vmatpush1.bf16.msra.mxu0 %v1465
        %1534 = vmatprep.subr.bf16.mxu0 0
        %1535 = vmatpush1.bf16.msra.mxu0 %v1466
        %1536 = vmatprep.subr.bf16.mxu0 0
        %1537 = vmatpush1.bf16.msra.mxu0 %v1467
        %1538 = vmatprep.subr.bf16.mxu0 0
        %1539 = vmatpush1.bf16.msra.mxu0 %v1468
        %1540 = vmatprep.subr.bf16.mxu0 0
        %1541 = vmatpush1.bf16.msra.mxu0 %v1469
        %1542 = vmatprep.subr.bf16.mxu0 0
        %1543 = vmatpush1.bf16.msra.mxu0 %v1470
        %1544 = vmatprep.subr.bf16.mxu0 0
        %1545 = vmatpush1.bf16.msra.mxu0 %v1471
        %1546 = vmatprep.subr.bf16.mxu0 0
        %1547 = vmatpush1.bf16.msra.mxu0 %v1472
        %1548 = vmatprep.subr.bf16.mxu0 0
        %1549 = vmatpush1.bf16.msra.mxu0 %v1473
        %1550 = vmatprep.subr.bf16.mxu0 0
        %1551 = vmatpush1.bf16.msra.mxu0 %v1474
        %1552 = vmatprep.subr.bf16.mxu0 0
        %1553 = vmatpush1.bf16.msra.mxu0 %v1475
        %1554 = vmatprep.subr.bf16.mxu0 0
        %1555 = vmatpush1.bf16.msra.mxu0 %v1476
        %1556 = vmatprep.subr.bf16.mxu0 0
        %1557 = vmatpush1.bf16.msra.mxu0 %v1477
        %1558 = vmatprep.mubr.bf16.mxu0 %v1267
        %1559 = vmatmul.mubr.bf16.gmra.mrb[0].mxu0 %v1266
        %v1560 = vpop.f32.mrb[0].mxu0
        %v1561 = vadd.f32 0.0, %v1560
        %v1562 = vpop.f32.mrb[0].mxu0
        %v1563 = vpop.f32.mrb[0].mxu0
        %v1564 = vadd.f32 0.0, %v1563
        %v1565 = vpop.f32.mrb[0].mxu0
        %1566 = vdwg.mxu0
        %1567 = vmatprep.subr.bf16.mxu0 0
        %1568 = vmatpush1.bf16.msra.mxu0 %v1478
        %1569 = vmatprep.subr.bf16.mxu0 0
        %1570 = vmatpush1.bf16.msra.mxu0 %v1479
        %1571 = vmatprep.subr.bf16.mxu0 0
        %1572 = vmatpush1.bf16.msra.mxu0 %v1480
        %1573 = vmatprep.subr.bf16.mxu0 0
        %1574 = vmatpush1.bf16.msra.mxu0 %v1481
        %1575 = vmatprep.subr.bf16.mxu0 0
        %1576 = vmatpush1.bf16.msra.mxu0 %v1482
        %1577 = vmatprep.subr.bf16.mxu0 0
        %1578 = vmatpush1.bf16.msra.mxu0 %v1483
        %1579 = vmatprep.subr.bf16.mxu0 0
        %1580 = vmatpush1.bf16.msra.mxu0 %v1484
        %1581 = vmatprep.subr.bf16.mxu0 0
        %1582 = vmatpush1.bf16.msra.mxu0 %v1485
        %1583 = vmatprep.subr.bf16.mxu0 0
        %1584 = vmatpush1.bf16.msra.mxu0 %v1486
        %1585 = vmatprep.subr.bf16.mxu0 0
        %1586 = vmatpush1.bf16.msra.mxu0 %v1487
        %1587 = vmatprep.subr.bf16.mxu0 0
        %1588 = vmatpush1.bf16.msra.mxu0 %v1488
        %1589 = vmatprep.subr.bf16.mxu0 0
        %1590 = vmatpush1.bf16.msra.mxu0 %v1489
        %1591 = vmatprep.subr.bf16.mxu0 0
        %1592 = vmatpush1.bf16.msra.mxu0 %v1490
        %1593 = vmatprep.subr.bf16.mxu0 0
        %1594 = vmatpush1.bf16.msra.mxu0 %v1491
        %1595 = vmatprep.subr.bf16.mxu0 0
        %1596 = vmatpush1.bf16.msra.mxu0 %v1492
        %1597 = vmatprep.subr.bf16.mxu0 0
        %1598 = vmatpush1.bf16.msra.mxu0 %v1493
        %1599 = vmatprep.mubr.bf16.mxu0 %v1269
        %1600 = vmatmul.mubr.bf16.gmra.mrb[0].mxu0 %v1268
        %v1601 = vpop.f32.mrb[0].mxu0
        %v1602 = vadd.f32 %v1561, %v1601
        %v1603 = vpop.f32.mrb[0].mxu0
        %v1604 = vpop.f32.mrb[0].mxu0
        %v1605 = vadd.f32 %v1564, %v1604
        %v1606 = vpop.f32.mrb[0].mxu0
        %1607 = vdwg.mxu0
        %v1608 = vadd.f32 %v1264, %v1602
        %v1609 = vadd.f32 %v1265, %v1605
        %1610 = vst [vmem:[%s284] sm:$0xff] %v1608
        %1611 = vst [vmem:[%s284 + $0x8] sm:$0xff] %v1609
        %s1612 = sand.u32 %s142, 1
        %s1613 = scalar_lea.sflag [#allocation4], %s1612
        %s1614 = sand.u32 %s142, 1
        %s1615 = smul.addr %s1614, 16
        %s1616 = scalar_lea.vmem [#allocation10], %s1615
        // Predicated region
        $region57: #{tpu_custom_call.1} parent=39 // pred_check
          %p1617 = pneg %p152
        $region58: #{tpu_custom_call.1} parent=39 // pred_check_branch
          %1619 = sbr.rel (%p1617) target = $region60
        $region59: #{tpu_custom_call.1} parent=39 // pred_region
          %s1620 = smul.u32 2, %s24
          %s1622 = ssub.s32 256, 256
          %1623 = vsyncadd %s1613, %s1622
          %s1624 = smul.addr %s1620, 128
          %s1625 = scalar_lea.hbm %s5, %s1624
          %s1626 = sshll.u32 %s1616, 4
          %s1627 = int_to_ptr.vmem [resolvable:$true] %s1626
          %1632 = dma.vmem_to_hbm [thread:$0]  %s1627, 256, %s1625, %s1613, 128, 128, 8
        $region60: #{tpu_custom_call.1} parent=39 // pred_fallthru
          _
      $region40: #{tpu_custom_call.1} parent=5 // pred_fallthru
        _
      %p1633 = scmp.le.s32.totalorder 2, %s19
      // Predicated region
      $region61: #{tpu_custom_call.1} parent=5 // pred_check
        %p1634 = pneg %p1633
      $region62: #{tpu_custom_call.1} parent=5 // pred_check_branch
        %1636 = sbr.rel (%p1634) target = $region64
      $region63: #{tpu_custom_call.1} parent=5 // pred_region
        %s1637 = ssub.s32 %s19, 2
        // Predicated region
        $region65: #{tpu_custom_call.1} parent=63 // pred_check
          %p1638 = pneg %p158
        $region66: #{tpu_custom_call.1} parent=63 // pred_check_branch
          %1640 = sbr.rel (%p1638) target = $region68
        $region67: #{tpu_custom_call.1} parent=63 // pred_region
          %s1641 = sand.u32 %s143, 1
          %s1642 = scalar_lea.sflag [#allocation4], %s1641
          %s1643 = sand.u32 %s143, 1
          %s1644 = smul.addr %s1643, 16
          %s1645 = scalar_lea.vmem [#allocation10], %s1644
          %1646 = dma.done %s1642, 256
        $region68: #{tpu_custom_call.1} parent=63 // pred_fallthru
          _
      $region64: #{tpu_custom_call.1} parent=5 // pred_fallthru
        _
    $region6: #{tpu_custom_call.1} parent=1 // loop_footer
      %s23 = sadd.s32 1, %s19
    $region7: #{tpu_custom_call.1} parent=1 // loop_footer_branch
      %18 = sbr.rel target = $region3
    $region8: #{tpu_custom_call.1} parent=1 // loop_exit
      _
    %1647 = vsyncpa [#allocation3], 1
    %s1648 = scalar_lea.sflag [#allocation3], 1
    %1649 = vsyncpa %s1648, 1
    %1650 = vsyncpa [#allocation6], 1
    %1651 = vsyncpa [#allocation9], 1
    %1652 = vsyncpa [#allocation4], 1
    %s1653 = scalar_lea.sflag [#allocation4], 1
    %1654 = vsyncpa %s1653, 1

</llo_original>
